<compile_context>
chip_gen: v7x
topology: tpu7x:2x2x1
jax: 0.10.0
libtpu: 0.0.40
codegen_flags: <defaults>
</compile_context>

<pallas_src>
import functools

import jax
import jax.numpy as jnp
from jax.experimental import pallas as pl
from jax.experimental.pallas import tpu as pltpu


def _round_up(x, m):
    return ((x + m - 1) // m) * m


@functools.lru_cache(maxsize=None)
def _tpu_tuning():
    """(vmem_limit_bytes, tm_target) derived from the local TPU generation."""
    vmem_phys = 64 * 1024 * 1024  # conservative default (v7x-sized)
    try:
        info = pltpu.get_tpu_info()
        vmem_phys = int(getattr(info, "vmem_capacity_bytes", vmem_phys))
    except Exception:
        pass
    vmem_limit = min(vmem_phys - 16 * 1024 * 1024, 100 * 1024 * 1024)
    vmem_limit = max(vmem_limit, 32 * 1024 * 1024)
    tm_target = 1024 if vmem_phys >= 100 * 1024 * 1024 else 512
    return vmem_limit, tm_target


def _pick_tm(M, target):
    """Row-tile size: big enough to amortize per-step overhead, but keep >=2
    grid steps along M when possible so the 'parallel' axis can shard across
    the two TensorCores on v7x."""
    if M >= 2 * target:
        return target
    half = _round_up(max(pl.cdiv(M, 2), 8), 8)
    return min(half, _round_up(M, 8))


# ----------------------------------------------------------------------------
# Kernel 1: fused matmul + per-output-channel BN affine
#           (+ optional residual add, + optional ReLU).  K is never tiled for
#           ResNet-50 shapes, so the weight tile is grid-resident and no
#           accumulator scratch is needed.
# ----------------------------------------------------------------------------
def _matmul_bn_kernel(x_ref, w_ref, s_ref, b_ref, *rest, apply_relu, has_res):
    if has_res:
        r_ref, o_ref = rest
    else:
        (o_ref,) = rest
    acc = jnp.dot(x_ref[...], w_ref[...], preferred_element_type=jnp.float32)
    out = acc * s_ref[...] + b_ref[...]
    if has_res:
        out = out + r_ref[...].astype(jnp.float32)
    if apply_relu:
        out = jnp.maximum(out, 0.0)
    o_ref[...] = out.astype(o_ref.dtype)


def matmul_bn_act(x2d, w, scale, bias, residual=None, apply_relu=True,
                  out_dtype=jnp.float32):
    """(M, K) @ (K, Cout) with fused BN affine, optional residual add and ReLU.

    No host-side padding: the ragged last M block is masked by Pallas (garbage
    rows only ever land in masked-out output rows; K is always full-width so
    the reduction is exact)."""
    M, K = x2d.shape
    K2, Cout = w.shape
    assert K == K2
    has_res = residual is not None

    vmem_limit, tm_target = _tpu_tuning()
    tm = _pick_tm(M, tm_target)

    # bf16 operands feed the MXU at full rate; accumulate / epilogue in f32.
    x2d = x2d.astype(jnp.bfloat16)
    w = w.astype(jnp.bfloat16)
    scale = scale.reshape(1, Cout).astype(jnp.float32)
    bias = bias.reshape(1, Cout).astype(jnp.float32)

    in_specs = [
        pl.BlockSpec((tm, K), lambda i: (i, 0)),       # activation tile
        pl.BlockSpec((K, Cout), lambda i: (0, 0)),     # resident weight
        pl.BlockSpec((1, Cout), lambda i: (0, 0)),     # folded BN scale
        pl.BlockSpec((1, Cout), lambda i: (0, 0)),     # folded BN bias
    ]
    args = [x2d, w, scale, bias]
    if has_res:
        in_specs.append(pl.BlockSpec((tm, Cout), lambda i: (i, 0)))
        args.append(residual.astype(jnp.bfloat16))

    kern = functools.partial(_matmul_bn_kernel, apply_relu=apply_relu,
                             has_res=has_res)
    return pl.pallas_call(
        kern,
        out_shape=jax.ShapeDtypeStruct((M, Cout), out_dtype),
        grid_spec=pltpu.PrefetchScalarGridSpec(
            num_scalar_prefetch=0,
            grid=(pl.cdiv(M, tm),),
            in_specs=in_specs,
            out_specs=pl.BlockSpec((tm, Cout), lambda i: (i, 0)),
        ),
        compiler_params=pltpu.CompilerParams(
            dimension_semantics=("parallel",),
            vmem_limit_bytes=vmem_limit),
    )(*args)


# ----------------------------------------------------------------------------
# Kernel 2: 3x3 / stride-1 / pad-1 conv + folded BN + ReLU.
#   One full image per grid step: the whole (H, W, C) block is DMA'd once,
#   the 1-px zero halo is built in VMEM (no HBM pad pass), and the conv is
#   9 accumulating (H*W, C) x (C, Cout) dots into an f32 accumulator.
# ----------------------------------------------------------------------------
def _conv3x3_bn_relu_kernel(x_ref, w_ref, s_ref, b_ref, o_ref, *, H, W):
    C = x_ref.shape[-1]
    Cout = o_ref.shape[-1]

    x = x_ref[0]                                           # (H, W, C) bf16
    zrow = jnp.zeros((1, W, C), x.dtype)
    xc = jnp.concatenate([zrow, x, zrow], axis=0)          # (H+2, W, C)
    zcol = jnp.zeros((H + 2, 1, C), x.dtype)
    xp = jnp.concatenate([zcol, xc, zcol], axis=1)         # (H+2, W+2, C)

    acc = jnp.zeros((H * W, Cout), jnp.float32)
    for kh in range(3):
        for kw in range(3):
            patch = xp[kh:kh + H, kw:kw + W, :].reshape(H * W, C)
            acc = acc + jnp.dot(patch, w_ref[kh * 3 + kw],
                                preferred_element_type=jnp.float32)

    out = jnp.maximum(acc * s_ref[...] + b_ref[...], 0.0)
    o_ref[0] = out.reshape(H, W, Cout).astype(o_ref.dtype)


def conv3x3_bn_relu(x_nhwc, w_oihw, scale, bias, out_dtype=jnp.bfloat16):
    N, H, W, C = x_nhwc.shape
    Cout = w_oihw.shape[0]
    # TODO(synk): for very large spatial extents (image block not fitting
    # VMEM) a row-tiled variant with an explicit halo would be needed; all
    # ResNet-50 stages (<= 56x56 x 512ch) fit comfortably.
    x = x_nhwc.astype(jnp.bfloat16)
    # (O, I, KH, KW) -> (KH, KW, I, O) -> (9, I, O): tap index = kh*3 + kw.
    wm = jnp.transpose(w_oihw, (2, 3, 1, 0)).reshape(9, C, Cout).astype(jnp.bfloat16)
    scale = scale.reshape(1, Cout).astype(jnp.float32)
    bias = bias.reshape(1, Cout).astype(jnp.float32)
    vmem_limit, _ = _tpu_tuning()

    return pl.pallas_call(
        functools.partial(_conv3x3_bn_relu_kernel, H=H, W=W),
        out_shape=jax.ShapeDtypeStruct((N, H, W, Cout), out_dtype),
        grid_spec=pltpu.PrefetchScalarGridSpec(
            num_scalar_prefetch=0,
            grid=(N,),
            in_specs=[pl.BlockSpec((1, H, W, C), lambda n: (n, 0, 0, 0)),
                      pl.BlockSpec((9, C, Cout), lambda n: (0, 0, 0)),
                      pl.BlockSpec((1, Cout), lambda n: (0, 0)),
                      pl.BlockSpec((1, Cout), lambda n: (0, 0))],
            out_specs=pl.BlockSpec((1, H, W, Cout), lambda n: (n, 0, 0, 0)),
        ),
        compiler_params=pltpu.CompilerParams(
            dimension_semantics=("parallel",),
            vmem_limit_bytes=vmem_limit),
    )(x, wm, scale, bias)


# ----------------------------------------------------------------------------
# Glue (plain JAX): BN folding and the block forward
# ----------------------------------------------------------------------------
def _fold_bn(bn, eps=1e-5):
    gamma, beta, mean, var = bn
    scale = gamma / jnp.sqrt(var + eps)
    return scale, beta - mean * scale


def resblock50_forward_nhwc(x_nhwc, params, stride, out_dtype=jnp.float32):
    N, H, W, Cin = x_nhwc.shape

    # stride on a 1x1 conv == spatial subsample then 1x1 conv.
    # TODO(synk): fold this strided subsample into the conv1 kernel's DMA
    # (data-dependent index_map / in-kernel strided slice) to avoid one extra
    # XLA pass over the full input for stride-2 blocks.
    xs = x_nhwc[:, ::stride, ::stride, :] if stride != 1 else x_nhwc
    Ho, Wo = xs.shape[1], xs.shape[2]
    M = N * Ho * Wo
    xs2d = xs.reshape(M, Cin)

    # conv1 (1x1, stride) + bn1 + relu      -> bf16 intermediate
    w1 = params["conv1_w"]
    Cmid = w1.shape[0]
    s1, b1 = _fold_bn(params["bn1"])
    out1 = matmul_bn_act(xs2d, jnp.transpose(w1[:, :, 0, 0], (1, 0)), s1, b1,
                         apply_relu=True, out_dtype=jnp.bfloat16)

    # conv2 (3x3, stride 1, pad 1) + bn2 + relu  (full image per step, halo in-kernel)
    s2, b2 = _fold_bn(params["bn2"])
    out2 = conv3x3_bn_relu(out1.reshape(N, Ho, Wo, Cmid), params["conv2_w"],
                           s2, b2, out_dtype=jnp.bfloat16)

    # downsample branch (1x1, stride) + bn  -> bf16 residual
    if "down_w" in params:
        sd, bd = _fold_bn(params["bn_down"])
        identity = matmul_bn_act(xs2d,
                                 jnp.transpose(params["down_w"][:, :, 0, 0], (1, 0)),
                                 sd, bd, apply_relu=False, out_dtype=jnp.bfloat16)
    else:
        identity = xs2d.astype(jnp.bfloat16)   # bf16 skip: halves residual HBM traffic

    # conv3 (1x1) + bn3 + residual add + relu, all fused in the kernel epilogue
    w3 = params["conv3_w"]
    Cexp = w3.shape[0]
    s3, b3 = _fold_bn(params["bn3"])
    out3 = matmul_bn_act(out2.reshape(M, Cmid), jnp.transpose(w3[:, :, 0, 0], (1, 0)),
                         s3, b3, residual=identity, apply_relu=True,
                         out_dtype=out_dtype)
    return out3.reshape(N, Ho, Wo, Cexp)


def resblock50_forward(x_nchw, params, stride):
    # NOTE: in a full network keep activations NHWC (and bf16) end-to-end and
    # call resblock50_forward_nhwc directly; these transposes / f32 output
    # only exist to match the PyTorch NCHW interface of the standalone module.
    x = jnp.transpose(x_nchw, (0, 2, 3, 1)).astype(jnp.float32)
    out = resblock50_forward_nhwc(x, params, stride, out_dtype=jnp.float32)
    return jnp.transpose(out, (0, 3, 1, 2))


# ----------------------------------------------------------------------------
# Pure-JAX reference (lax convs) for a correctness check
# ----------------------------------------------------------------------------
def _ref_forward(x, params, stride):
    def conv(x, w, s, padding):
        return jax.lax.conv_general_dilated(
            x, w, (s, s), padding,
            dimension_numbers=("NCHW", "OIHW", "NCHW"),
            precision=jax.lax.Precision.HIGHEST)

    def bn(x, p):
        g, b, m, v = p
        inv = g / jnp.sqrt(v + 1e-5)
        return (x - m[None, :, None, None]) * inv[None, :, None, None] + b[None, :, None, None]

    out = jax.nn.relu(bn(conv(x, params["conv1_w"], stride, "VALID"), params["bn1"]))
    out = jax.nn.relu(bn(conv(out, params["conv2_w"], 1, "SAME"), params["bn2"]))
    out = bn(conv(out, params["conv3_w"], 1, "VALID"), params["bn3"])
    identity = x
    if "down_w" in params:
        identity = bn(conv(x, params["down_w"], stride, "VALID"), params["bn_down"])
    return jax.nn.relu(out + identity)


# ----------------------------------------------------------------------------
# Deterministic parameter construction
# ----------------------------------------------------------------------------
def make_params(key, in_channels, out_channels, stride):
    ks = jax.random.split(key, 20)

    def bn_params(k0, k1, k2, k3, c):
        gamma = 1.0 + 0.1 * jax.random.normal(k0, (c,), jnp.float32)
        beta = 0.1 * jax.random.normal(k1, (c,), jnp.float32)
        mean = 0.1 * jax.random.normal(k2, (c,), jnp.float32)
        var = jax.random.uniform(k3, (c,), jnp.float32, 0.5, 1.5)
        return (gamma, beta, mean, var)

    c = out_channels
    params = {
        "conv1_w": 0.1 * jax.random.normal(ks[0], (c, in_channels, 1, 1), jnp.float32),
        "bn1": bn_params(ks[1], ks[2], ks[3], ks[4], c),
        "conv2_w": 0.1 * jax.random.normal(ks[5], (c, c, 3, 3), jnp.float32),
        "bn2": bn_params(ks[6], ks[7], ks[8], ks[9], c),
        "conv3_w": 0.1 * jax.random.normal(ks[10], (4 * c, c, 1, 1), jnp.float32),
        "bn3": bn_params(ks[11], ks[12], ks[13], ks[14], 4 * c),
    }
    if stride != 1 or in_channels != 4 * c:
        params["down_w"] = 0.1 * jax.random.normal(
            ks[15], (4 * c, in_channels, 1, 1), jnp.float32)
        params["bn_down"] = bn_params(ks[16], ks[17], ks[18], ks[19], 4 * c)
    return params


if __name__ == "__main__":
    key = jax.random.PRNGKey(0)
    kx, kp = jax.random.split(key)

    N, Cin, H, W = 2, 4, 16, 16
    out_channels, stride = 8, 2          # exercises the downsample branch

    x = jax.random.normal(kx, (N, Cin, H, W), jnp.float32)
    params = make_params(kp, Cin, out_channels, stride)

    fwd = jax.jit(resblock50_forward, static_argnums=2)
    out = jax.block_until_ready(fwd(x, params, stride))

    ref = jax.block_until_ready(_ref_forward(x, params, stride))
    assert out.shape == ref.shape == (N, 4 * out_channels, H // stride, W // stride)
    # bf16 MXU operands / bf16 intermediates (f32 accumulation + epilogue):
    # tolerance relaxed vs pure f32.
    max_err = float(jnp.max(jnp.abs(out - ref)))
    assert max_err < 5e-2, f"max abs error too large: {max_err}"

    print("KERNEL_OK")
</pallas_src>

<mosaic_0001>
module attributes {stable_mosaic.version = 11 : i64} {
  func.func @_matmul_bn_kernel(%arg0: i32, %arg1: memref<64x4xbf16, #tpu.memory_space<vmem>>, %arg2: memref<4x32xbf16, #tpu.memory_space<vmem>>, %arg3: memref<1x32xf32, #tpu.memory_space<vmem>>, %arg4: memref<1x32xf32, #tpu.memory_space<vmem>>, %arg5: memref<64x32xbf16, #tpu.memory_space<vmem>>) attributes {dimension_semantics = [#tpu.dimension_semantics<parallel>], iteration_bounds = array<i64: 2>, scalar_prefetch = 0 : i64, scratch_operands = 0 : i64, tpu.core_type = #tpu.core_type<tc>, window_params = [{transform_indices = @transform_0, window_bounds = array<i64: 64, 4>}, {pipeline_mode = #tpu.pipeline_mode<synchronous>, transform_indices = @transform_1, window_bounds = array<i64: 4, 32>}, {pipeline_mode = #tpu.pipeline_mode<synchronous>, transform_indices = @transform_2, window_bounds = array<i64: 1, 32>}, {pipeline_mode = #tpu.pipeline_mode<synchronous>, transform_indices = @transform_3, window_bounds = array<i64: 1, 32>}, {transform_indices = @transform_4, window_bounds = array<i64: 64, 32>}]} {
    %c0 = arith.constant 0 : index
    %c0_0 = arith.constant 0 : index
    %0 = vector.load %arg1[%c0, %c0_0] : memref<64x4xbf16, #tpu.memory_space<vmem>>, vector<64x4xbf16>
    %c0_1 = arith.constant 0 : index
    %c0_2 = arith.constant 0 : index
    %1 = vector.load %arg2[%c0_1, %c0_2] : memref<4x32xbf16, #tpu.memory_space<vmem>>, vector<4x32xbf16>
    %cst = arith.constant dense<0.000000e+00> : vector<64x32xf32>
    %2 = tpu.matmul %0, %1, %cst {dimension_numbers = #tpu.dot_dimension_numbers<[1], [0], [0], [1], [0, 0, 1, 1], [], []>} : vector<64x4xbf16>, vector<4x32xbf16>, vector<64x32xf32> -> vector<64x32xf32>
    %c0_3 = arith.constant 0 : index
    %c0_4 = arith.constant 0 : index
    %3 = vector.load %arg3[%c0_3, %c0_4] : memref<1x32xf32, #tpu.memory_space<vmem>>, vector<1x32xf32>
    %4 = vector.broadcast %3 : vector<1x32xf32> to vector<64x32xf32>
    %5 = arith.mulf %2, %4 : vector<64x32xf32>
    %c0_5 = arith.constant 0 : index
    %c0_6 = arith.constant 0 : index
    %6 = vector.load %arg4[%c0_5, %c0_6] : memref<1x32xf32, #tpu.memory_space<vmem>>, vector<1x32xf32>
    %7 = vector.broadcast %6 : vector<1x32xf32> to vector<64x32xf32>
    %8 = arith.addf %5, %7 : vector<64x32xf32>
    %9 = arith.truncf %8 : vector<64x32xf32> to vector<64x32xbf16>
    %c0_7 = arith.constant 0 : index
    %c0_8 = arith.constant 0 : index
    %10 = vector.load %arg5[%c0_7, %c0_8] : memref<64x32xbf16, #tpu.memory_space<vmem>>, vector<64x32xbf16>
    tpu.vector_store %arg5[%c0_7, %c0_8], %9 {strides = array<i32>} : memref<64x32xbf16, #tpu.memory_space<vmem>>, vector<64x32xbf16>,
    return
  }
  func.func @transform_0(%arg0: i32) -> (i32, i32) {
    %c0_i32 = arith.constant 0 : i32
    %c0_i32_0 = arith.constant 0 : i32
    return %arg0, %c0_i32 : i32, i32
  }
  func.func @transform_1(%arg0: i32) -> (i32, i32) {
    %c0_i32 = arith.constant 0 : i32
    %c0_i32_0 = arith.constant 0 : i32
    %c0_i32_1 = arith.constant 0 : i32
    return %c0_i32, %c0_i32_0 : i32, i32
  }
  func.func @transform_2(%arg0: i32) -> (i32, i32) {
    %c0_i32 = arith.constant 0 : i32
    %c0_i32_0 = arith.constant 0 : i32
    %c0_i32_1 = arith.constant 0 : i32
    return %c0_i32, %c0_i32_0 : i32, i32
  }
  func.func @transform_3(%arg0: i32) -> (i32, i32) {
    %c0_i32 = arith.constant 0 : i32
    %c0_i32_0 = arith.constant 0 : i32
    %c0_i32_1 = arith.constant 0 : i32
    return %c0_i32, %c0_i32_0 : i32, i32
  }
  func.func @transform_4(%arg0: i32) -> (i32, i32) {
    %c0_i32 = arith.constant 0 : i32
    %c0_i32_0 = arith.constant 0 : i32
    return %arg0, %c0_i32 : i32, i32
  }
}

module attributes {stable_mosaic.version = 11 : i64} {
  func.func @_matmul_bn_kernel(%arg0: i32, %arg1: memref<64x4xbf16, #tpu.memory_space<vmem>>, %arg2: memref<4x8xbf16, #tpu.memory_space<vmem>>, %arg3: memref<1x8xf32, #tpu.memory_space<vmem>>, %arg4: memref<1x8xf32, #tpu.memory_space<vmem>>, %arg5: memref<64x8xbf16, #tpu.memory_space<vmem>>) attributes {dimension_semantics = [#tpu.dimension_semantics<parallel>], iteration_bounds = array<i64: 2>, scalar_prefetch = 0 : i64, scratch_operands = 0 : i64, tpu.core_type = #tpu.core_type<tc>, window_params = [{transform_indices = @transform_0, window_bounds = array<i64: 64, 4>}, {pipeline_mode = #tpu.pipeline_mode<synchronous>, transform_indices = @transform_1, window_bounds = array<i64: 4, 8>}, {pipeline_mode = #tpu.pipeline_mode<synchronous>, transform_indices = @transform_2, window_bounds = array<i64: 1, 8>}, {pipeline_mode = #tpu.pipeline_mode<synchronous>, transform_indices = @transform_3, window_bounds = array<i64: 1, 8>}, {transform_indices = @transform_4, window_bounds = array<i64: 64, 8>}]} {
    %c0 = arith.constant 0 : index
    %c0_0 = arith.constant 0 : index
    %0 = vector.load %arg1[%c0, %c0_0] : memref<64x4xbf16, #tpu.memory_space<vmem>>, vector<64x4xbf16>
    %c0_1 = arith.constant 0 : index
    %c0_2 = arith.constant 0 : index
    %1 = vector.load %arg2[%c0_1, %c0_2] : memref<4x8xbf16, #tpu.memory_space<vmem>>, vector<4x8xbf16>
    %cst = arith.constant dense<0.000000e+00> : vector<64x8xf32>
    %2 = tpu.matmul %0, %1, %cst {dimension_numbers = #tpu.dot_dimension_numbers<[1], [0], [0], [1], [0, 0, 1, 1], [], []>} : vector<64x4xbf16>, vector<4x8xbf16>, vector<64x8xf32> -> vector<64x8xf32>
    %c0_3 = arith.constant 0 : index
    %c0_4 = arith.constant 0 : index
    %3 = vector.load %arg3[%c0_3, %c0_4] : memref<1x8xf32, #tpu.memory_space<vmem>>, vector<1x8xf32>
    %4 = vector.broadcast %3 : vector<1x8xf32> to vector<64x8xf32>
    %5 = arith.mulf %2, %4 : vector<64x8xf32>
    %c0_5 = arith.constant 0 : index
    %c0_6 = arith.constant 0 : index
    %6 = vector.load %arg4[%c0_5, %c0_6] : memref<1x8xf32, #tpu.memory_space<vmem>>, vector<1x8xf32>
    %7 = vector.broadcast %6 : vector<1x8xf32> to vector<64x8xf32>
    %8 = arith.addf %5, %7 : vector<64x8xf32>
    %cst_7 = arith.constant 0.000000e+00 : f32
    %9 = vector.broadcast %cst_7 : f32 to vector<64x8xf32>
    %10 = arith.maximumf %8, %9 : vector<64x8xf32>
    %11 = arith.truncf %10 : vector<64x8xf32> to vector<64x8xbf16>
    %c0_8 = arith.constant 0 : index
    %c0_9 = arith.constant 0 : index
    %12 = vector.load %arg5[%c0_8, %c0_9] : memref<64x8xbf16, #tpu.memory_space<vmem>>, vector<64x8xbf16>
    tpu.vector_store %arg5[%c0_8, %c0_9], %11 {strides = array<i32>} : memref<64x8xbf16, #tpu.memory_space<vmem>>, vector<64x8xbf16>,
    return
  }
  func.func @transform_0(%arg0: i32) -> (i32, i32) {
    %c0_i32 = arith.constant 0 : i32
    %c0_i32_0 = arith.constant 0 : i32
    return %arg0, %c0_i32 : i32, i32
  }
  func.func @transform_1(%arg0: i32) -> (i32, i32) {
    %c0_i32 = arith.constant 0 : i32
    %c0_i32_0 = arith.constant 0 : i32
    %c0_i32_1 = arith.constant 0 : i32
    return %c0_i32, %c0_i32_0 : i32, i32
  }
  func.func @transform_2(%arg0: i32) -> (i32, i32) {
    %c0_i32 = arith.constant 0 : i32
    %c0_i32_0 = arith.constant 0 : i32
    %c0_i32_1 = arith.constant 0 : i32
    return %c0_i32, %c0_i32_0 : i32, i32
  }
  func.func @transform_3(%arg0: i32) -> (i32, i32) {
    %c0_i32 = arith.constant 0 : i32
    %c0_i32_0 = arith.constant 0 : i32
    %c0_i32_1 = arith.constant 0 : i32
    return %c0_i32, %c0_i32_0 : i32, i32
  }
  func.func @transform_4(%arg0: i32) -> (i32, i32) {
    %c0_i32 = arith.constant 0 : i32
    %c0_i32_0 = arith.constant 0 : i32
    return %arg0, %c0_i32 : i32, i32
  }
}

module attributes {stable_mosaic.version = 11 : i64} {
  func.func @_conv3x3_bn_relu_kernel(%arg0: i32, %arg1: memref<1x8x8x8xbf16, #tpu.memory_space<vmem>>, %arg2: memref<9x8x8xbf16, #tpu.memory_space<vmem>>, %arg3: memref<1x8xf32, #tpu.memory_space<vmem>>, %arg4: memref<1x8xf32, #tpu.memory_space<vmem>>, %arg5: memref<1x8x8x8xbf16, #tpu.memory_space<vmem>>) attributes {dimension_semantics = [#tpu.dimension_semantics<parallel>], iteration_bounds = array<i64: 2>, scalar_prefetch = 0 : i64, scratch_operands = 0 : i64, tpu.core_type = #tpu.core_type<tc>, window_params = [{transform_indices = @transform_0, window_bounds = array<i64: 1, 8, 8, 8>}, {pipeline_mode = #tpu.pipeline_mode<synchronous>, transform_indices = @transform_1, window_bounds = array<i64: 9, 8, 8>}, {pipeline_mode = #tpu.pipeline_mode<synchronous>, transform_indices = @transform_2, window_bounds = array<i64: 1, 8>}, {pipeline_mode = #tpu.pipeline_mode<synchronous>, transform_indices = @transform_3, window_bounds = array<i64: 1, 8>}, {transform_indices = @transform_4, window_bounds = array<i64: 1, 8, 8, 8>}]} {
    %c0 = arith.constant 0 : index
    %c0_0 = arith.constant 0 : index
    %c0_1 = arith.constant 0 : index
    %c0_2 = arith.constant 0 : index
    %0 = vector.load %arg1[%c0, %c0_0, %c0_1, %c0_2] : memref<1x8x8x8xbf16, #tpu.memory_space<vmem>>, vector<1x8x8x8xbf16>
    %1 = vector.shape_cast %0 : vector<1x8x8x8xbf16> to vector<8x8x8xbf16>
    %cst = arith.constant 0.000000e+00 : bf16
    %2 = vector.broadcast %cst : bf16 to vector<1x8x8xbf16>
    %3 = tpu.concatenate %2, %1, %2 in 0 : vector<1x8x8xbf16>, vector<8x8x8xbf16>, vector<1x8x8xbf16> -> vector<10x8x8xbf16>
    %cst_3 = arith.constant 0.000000e+00 : bf16
    %4 = vector.broadcast %cst_3 : bf16 to vector<10x1x8xbf16>
    %5 = tpu.concatenate %4, %3, %4 in 1 : vector<10x1x8xbf16>, vector<10x8x8xbf16>, vector<10x1x8xbf16> -> vector<10x10x8xbf16>
    %cst_4 = arith.constant 0.000000e+00 : f32
    %6 = vector.broadcast %cst_4 : f32 to vector<64x8xf32>
    %7 = vector.extract_strided_slice %5 {offsets = [0, 0, 0], sizes = [8, 8, 8], strides = [1, 1, 1]} : vector<10x10x8xbf16> to vector<8x8x8xbf16>
    %8 = vector.shape_cast %7 : vector<8x8x8xbf16> to vector<64x8xbf16>
    %c0_5 = arith.constant 0 : index
    %c0_6 = arith.constant 0 : index
    %c0_7 = arith.constant 0 : index
    %9 = vector.load %arg2[%c0_5, %c0_6, %c0_7] : memref<9x8x8xbf16, #tpu.memory_space<vmem>>, vector<1x8x8xbf16>
    %10 = vector.shape_cast %9 : vector<1x8x8xbf16> to vector<8x8xbf16>
    %cst_8 = arith.constant dense<0.000000e+00> : vector<64x8xf32>
    %11 = tpu.matmul %8, %10, %cst_8 {dimension_numbers = #tpu.dot_dimension_numbers<[1], [0], [0], [1], [0, 0, 1, 1], [], []>} : vector<64x8xbf16>, vector<8x8xbf16>, vector<64x8xf32> -> vector<64x8xf32>
    %12 = arith.addf %6, %11 : vector<64x8xf32>
    %13 = vector.extract_strided_slice %5 {offsets = [0, 1, 0], sizes = [8, 8, 8], strides = [1, 1, 1]} : vector<10x10x8xbf16> to vector<8x8x8xbf16>
    %14 = vector.shape_cast %13 : vector<8x8x8xbf16> to vector<64x8xbf16>
    %c1 = arith.constant 1 : index
    %c0_9 = arith.constant 0 : index
    %c0_10 = arith.constant 0 : index
    %15 = vector.load %arg2[%c1, %c0_9, %c0_10] : memref<9x8x8xbf16, #tpu.memory_space<vmem>>, vector<1x8x8xbf16>
    %16 = vector.shape_cast %15 : vector<1x8x8xbf16> to vector<8x8xbf16>
    %cst_11 = arith.constant dense<0.000000e+00> : vector<64x8xf32>
    %17 = tpu.matmul %14, %16, %cst_11 {dimension_numbers = #tpu.dot_dimension_numbers<[1], [0], [0], [1], [0, 0, 1, 1], [], []>} : vector<64x8xbf16>, vector<8x8xbf16>, vector<64x8xf32> -> vector<64x8xf32>
    %18 = arith.addf %12, %17 : vector<64x8xf32>
    %19 = vector.extract_strided_slice %5 {offsets = [0, 2, 0], sizes = [8, 8, 8], strides = [1, 1, 1]} : vector<10x10x8xbf16> to vector<8x8x8xbf16>
    %20 = vector.shape_cast %19 : vector<8x8x8xbf16> to vector<64x8xbf16>
    %c2 = arith.constant 2 : index
    %c0_12 = arith.constant 0 : index
    %c0_13 = arith.constant 0 : index
    %21 = vector.load %arg2[%c2, %c0_12, %c0_13] : memref<9x8x8xbf16, #tpu.memory_space<vmem>>, vector<1x8x8xbf16>
    %22 = vector.shape_cast %21 : vector<1x8x8xbf16> to vector<8x8xbf16>
    %cst_14 = arith.constant dense<0.000000e+00> : vector<64x8xf32>
    %23 = tpu.matmul %20, %22, %cst_14 {dimension_numbers = #tpu.dot_dimension_numbers<[1], [0], [0], [1], [0, 0, 1, 1], [], []>} : vector<64x8xbf16>, vector<8x8xbf16>, vector<64x8xf32> -> vector<64x8xf32>
    %24 = arith.addf %18, %23 : vector<64x8xf32>
    %25 = vector.extract_strided_slice %5 {offsets = [1, 0, 0], sizes = [8, 8, 8], strides = [1, 1, 1]} : vector<10x10x8xbf16> to vector<8x8x8xbf16>
    %26 = vector.shape_cast %25 : vector<8x8x8xbf16> to vector<64x8xbf16>
    %c3 = arith.constant 3 : index
    %c0_15 = arith.constant 0 : index
    %c0_16 = arith.constant 0 : index
    %27 = vector.load %arg2[%c3, %c0_15, %c0_16] : memref<9x8x8xbf16, #tpu.memory_space<vmem>>, vector<1x8x8xbf16>
    %28 = vector.shape_cast %27 : vector<1x8x8xbf16> to vector<8x8xbf16>
    %cst_17 = arith.constant dense<0.000000e+00> : vector<64x8xf32>
    %29 = tpu.matmul %26, %28, %cst_17 {dimension_numbers = #tpu.dot_dimension_numbers<[1], [0], [0], [1], [0, 0, 1, 1], [], []>} : vector<64x8xbf16>, vector<8x8xbf16>, vector<64x8xf32> -> vector<64x8xf32>
    %30 = arith.addf %24, %29 : vector<64x8xf32>
    %31 = vector.extract_strided_slice %5 {offsets = [1, 1, 0], sizes = [8, 8, 8], strides = [1, 1, 1]} : vector<10x10x8xbf16> to vector<8x8x8xbf16>
    %32 = vector.shape_cast %31 : vector<8x8x8xbf16> to vector<64x8xbf16>
    %c4 = arith.constant 4 : index
    %c0_18 = arith.constant 0 : index
    %c0_19 = arith.constant 0 : index
    %33 = vector.load %arg2[%c4, %c0_18, %c0_19] : memref<9x8x8xbf16, #tpu.memory_space<vmem>>, vector<1x8x8xbf16>
    %34 = vector.shape_cast %33 : vector<1x8x8xbf16> to vector<8x8xbf16>
    %cst_20 = arith.constant dense<0.000000e+00> : vector<64x8xf32>
    %35 = tpu.matmul %32, %34, %cst_20 {dimension_numbers = #tpu.dot_dimension_numbers<[1], [0], [0], [1], [0, 0, 1, 1], [], []>} : vector<64x8xbf16>, vector<8x8xbf16>, vector<64x8xf32> -> vector<64x8xf32>
    %36 = arith.addf %30, %35 : vector<64x8xf32>
    %37 = vector.extract_strided_slice %5 {offsets = [1, 2, 0], sizes = [8, 8, 8], strides = [1, 1, 1]} : vector<10x10x8xbf16> to vector<8x8x8xbf16>
    %38 = vector.shape_cast %37 : vector<8x8x8xbf16> to vector<64x8xbf16>
    %c5 = arith.constant 5 : index
    %c0_21 = arith.constant 0 : index
    %c0_22 = arith.constant 0 : index
    %39 = vector.load %arg2[%c5, %c0_21, %c0_22] : memref<9x8x8xbf16, #tpu.memory_space<vmem>>, vector<1x8x8xbf16>
    %40 = vector.shape_cast %39 : vector<1x8x8xbf16> to vector<8x8xbf16>
    %cst_23 = arith.constant dense<0.000000e+00> : vector<64x8xf32>
    %41 = tpu.matmul %38, %40, %cst_23 {dimension_numbers = #tpu.dot_dimension_numbers<[1], [0], [0], [1], [0, 0, 1, 1], [], []>} : vector<64x8xbf16>, vector<8x8xbf16>, vector<64x8xf32> -> vector<64x8xf32>
    %42 = arith.addf %36, %41 : vector<64x8xf32>
    %43 = vector.extract_strided_slice %5 {offsets = [2, 0, 0], sizes = [8, 8, 8], strides = [1, 1, 1]} : vector<10x10x8xbf16> to vector<8x8x8xbf16>
    %44 = vector.shape_cast %43 : vector<8x8x8xbf16> to vector<64x8xbf16>
    %c6 = arith.constant 6 : index
    %c0_24 = arith.constant 0 : index
    %c0_25 = arith.constant 0 : index
    %45 = vector.load %arg2[%c6, %c0_24, %c0_25] : memref<9x8x8xbf16, #tpu.memory_space<vmem>>, vector<1x8x8xbf16>
    %46 = vector.shape_cast %45 : vector<1x8x8xbf16> to vector<8x8xbf16>
    %cst_26 = arith.constant dense<0.000000e+00> : vector<64x8xf32>
    %47 = tpu.matmul %44, %46, %cst_26 {dimension_numbers = #tpu.dot_dimension_numbers<[1], [0], [0], [1], [0, 0, 1, 1], [], []>} : vector<64x8xbf16>, vector<8x8xbf16>, vector<64x8xf32> -> vector<64x8xf32>
    %48 = arith.addf %42, %47 : vector<64x8xf32>
    %49 = vector.extract_strided_slice %5 {offsets = [2, 1, 0], sizes = [8, 8, 8], strides = [1, 1, 1]} : vector<10x10x8xbf16> to vector<8x8x8xbf16>
    %50 = vector.shape_cast %49 : vector<8x8x8xbf16> to vector<64x8xbf16>
    %c7 = arith.constant 7 : index
    %c0_27 = arith.constant 0 : index
    %c0_28 = arith.constant 0 : index
    %51 = vector.load %arg2[%c7, %c0_27, %c0_28] : memref<9x8x8xbf16, #tpu.memory_space<vmem>>, vector<1x8x8xbf16>
    %52 = vector.shape_cast %51 : vector<1x8x8xbf16> to vector<8x8xbf16>
    %cst_29 = arith.constant dense<0.000000e+00> : vector<64x8xf32>
    %53 = tpu.matmul %50, %52, %cst_29 {dimension_numbers = #tpu.dot_dimension_numbers<[1], [0], [0], [1], [0, 0, 1, 1], [], []>} : vector<64x8xbf16>, vector<8x8xbf16>, vector<64x8xf32> -> vector<64x8xf32>
    %54 = arith.addf %48, %53 : vector<64x8xf32>
    %55 = vector.extract_strided_slice %5 {offsets = [2, 2, 0], sizes = [8, 8, 8], strides = [1, 1, 1]} : vector<10x10x8xbf16> to vector<8x8x8xbf16>
    %56 = vector.shape_cast %55 : vector<8x8x8xbf16> to vector<64x8xbf16>
    %c8 = arith.constant 8 : index
    %c0_30 = arith.constant 0 : index
    %c0_31 = arith.constant 0 : index
    %57 = vector.load %arg2[%c8, %c0_30, %c0_31] : memref<9x8x8xbf16, #tpu.memory_space<vmem>>, vector<1x8x8xbf16>
    %58 = vector.shape_cast %57 : vector<1x8x8xbf16> to vector<8x8xbf16>
    %cst_32 = arith.constant dense<0.000000e+00> : vector<64x8xf32>
    %59 = tpu.matmul %56, %58, %cst_32 {dimension_numbers = #tpu.dot_dimension_numbers<[1], [0], [0], [1], [0, 0, 1, 1], [], []>} : vector<64x8xbf16>, vector<8x8xbf16>, vector<64x8xf32> -> vector<64x8xf32>
    %60 = arith.addf %54, %59 : vector<64x8xf32>
    %c0_33 = arith.constant 0 : index
    %c0_34 = arith.constant 0 : index
    %61 = vector.load %arg3[%c0_33, %c0_34] : memref<1x8xf32, #tpu.memory_space<vmem>>, vector<1x8xf32>
    %62 = vector.broadcast %61 : vector<1x8xf32> to vector<64x8xf32>
    %63 = arith.mulf %60, %62 : vector<64x8xf32>
    %c0_35 = arith.constant 0 : index
    %c0_36 = arith.constant 0 : index
    %64 = vector.load %arg4[%c0_35, %c0_36] : memref<1x8xf32, #tpu.memory_space<vmem>>, vector<1x8xf32>
    %65 = vector.broadcast %64 : vector<1x8xf32> to vector<64x8xf32>
    %66 = arith.addf %63, %65 : vector<64x8xf32>
    %cst_37 = arith.constant 0.000000e+00 : f32
    %67 = vector.broadcast %cst_37 : f32 to vector<64x8xf32>
    %68 = arith.maximumf %66, %67 : vector<64x8xf32>
    %69 = vector.shape_cast %68 : vector<64x8xf32> to vector<8x8x8xf32>
    %70 = arith.truncf %69 : vector<8x8x8xf32> to vector<8x8x8xbf16>
    %c0_38 = arith.constant 0 : index
    %c0_39 = arith.constant 0 : index
    %c0_40 = arith.constant 0 : index
    %c0_41 = arith.constant 0 : index
    %71 = vector.load %arg5[%c0_38, %c0_39, %c0_40, %c0_41] : memref<1x8x8x8xbf16, #tpu.memory_space<vmem>>, vector<1x8x8x8xbf16>
    %72 = vector.shape_cast %71 : vector<1x8x8x8xbf16> to vector<8x8x8xbf16>
    %73 = vector.shape_cast %70 : vector<8x8x8xbf16> to vector<1x8x8x8xbf16>
    tpu.vector_store %arg5[%c0_38, %c0_39, %c0_40, %c0_41], %73 {strides = array<i32>} : memref<1x8x8x8xbf16, #tpu.memory_space<vmem>>, vector<1x8x8x8xbf16>,
    return
  }
  func.func @transform_0(%arg0: i32) -> (i32, i32, i32, i32) {
    %c0_i32 = arith.constant 0 : i32
    %c0_i32_0 = arith.constant 0 : i32
    %c0_i32_1 = arith.constant 0 : i32
    %c0_i32_2 = arith.constant 0 : i32
    return %arg0, %c0_i32, %c0_i32_0, %c0_i32_1 : i32, i32, i32, i32
  }
  func.func @transform_1(%arg0: i32) -> (i32, i32, i32) {
    %c0_i32 = arith.constant 0 : i32
    %c0_i32_0 = arith.constant 0 : i32
    %c0_i32_1 = arith.constant 0 : i32
    %c0_i32_2 = arith.constant 0 : i32
    return %c0_i32, %c0_i32_0, %c0_i32_1 : i32, i32, i32
  }
  func.func @transform_2(%arg0: i32) -> (i32, i32) {
    %c0_i32 = arith.constant 0 : i32
    %c0_i32_0 = arith.constant 0 : i32
    %c0_i32_1 = arith.constant 0 : i32
    return %c0_i32, %c0_i32_0 : i32, i32
  }
  func.func @transform_3(%arg0: i32) -> (i32, i32) {
    %c0_i32 = arith.constant 0 : i32
    %c0_i32_0 = arith.constant 0 : i32
    %c0_i32_1 = arith.constant 0 : i32
    return %c0_i32, %c0_i32_0 : i32, i32
  }
  func.func @transform_4(%arg0: i32) -> (i32, i32, i32, i32) {
    %c0_i32 = arith.constant 0 : i32
    %c0_i32_0 = arith.constant 0 : i32
    %c0_i32_1 = arith.constant 0 : i32
    %c0_i32_2 = arith.constant 0 : i32
    return %arg0, %c0_i32, %c0_i32_0, %c0_i32_1 : i32, i32, i32, i32
  }
}

module attributes {stable_mosaic.version = 11 : i64} {
  func.func @_matmul_bn_kernel(%arg0: i32, %arg1: memref<64x8xbf16, #tpu.memory_space<vmem>>, %arg2: memref<8x32xbf16, #tpu.memory_space<vmem>>, %arg3: memref<1x32xf32, #tpu.memory_space<vmem>>, %arg4: memref<1x32xf32, #tpu.memory_space<vmem>>, %arg5: memref<64x32xbf16, #tpu.memory_space<vmem>>, %arg6: memref<64x32xf32, #tpu.memory_space<vmem>>) attributes {dimension_semantics = [#tpu.dimension_semantics<parallel>], iteration_bounds = array<i64: 2>, scalar_prefetch = 0 : i64, scratch_operands = 0 : i64, tpu.core_type = #tpu.core_type<tc>, window_params = [{transform_indices = @transform_0, window_bounds = array<i64: 64, 8>}, {pipeline_mode = #tpu.pipeline_mode<synchronous>, transform_indices = @transform_1, window_bounds = array<i64: 8, 32>}, {pipeline_mode = #tpu.pipeline_mode<synchronous>, transform_indices = @transform_2, window_bounds = array<i64: 1, 32>}, {pipeline_mode = #tpu.pipeline_mode<synchronous>, transform_indices = @transform_3, window_bounds = array<i64: 1, 32>}, {transform_indices = @transform_4, window_bounds = array<i64: 64, 32>}, {transform_indices = @transform_5, window_bounds = array<i64: 64, 32>}]} {
    %c0 = arith.constant 0 : index
    %c0_0 = arith.constant 0 : index
    %0 = vector.load %arg1[%c0, %c0_0] : memref<64x8xbf16, #tpu.memory_space<vmem>>, vector<64x8xbf16>
    %c0_1 = arith.constant 0 : index
    %c0_2 = arith.constant 0 : index
    %1 = vector.load %arg2[%c0_1, %c0_2] : memref<8x32xbf16, #tpu.memory_space<vmem>>, vector<8x32xbf16>
    %cst = arith.constant dense<0.000000e+00> : vector<64x32xf32>
    %2 = tpu.matmul %0, %1, %cst {dimension_numbers = #tpu.dot_dimension_numbers<[1], [0], [0], [1], [0, 0, 1, 1], [], []>} : vector<64x8xbf16>, vector<8x32xbf16>, vector<64x32xf32> -> vector<64x32xf32>
    %c0_3 = arith.constant 0 : index
    %c0_4 = arith.constant 0 : index
    %3 = vector.load %arg3[%c0_3, %c0_4] : memref<1x32xf32, #tpu.memory_space<vmem>>, vector<1x32xf32>
    %4 = vector.broadcast %3 : vector<1x32xf32> to vector<64x32xf32>
    %5 = arith.mulf %2, %4 : vector<64x32xf32>
    %c0_5 = arith.constant 0 : index
    %c0_6 = arith.constant 0 : index
    %6 = vector.load %arg4[%c0_5, %c0_6] : memref<1x32xf32, #tpu.memory_space<vmem>>, vector<1x32xf32>
    %7 = vector.broadcast %6 : vector<1x32xf32> to vector<64x32xf32>
    %8 = arith.addf %5, %7 : vector<64x32xf32>
    %c0_7 = arith.constant 0 : index
    %c0_8 = arith.constant 0 : index
    %9 = vector.load %arg5[%c0_7, %c0_8] : memref<64x32xbf16, #tpu.memory_space<vmem>>, vector<64x32xbf16>
    %10 = arith.extf %9 : vector<64x32xbf16> to vector<64x32xf32>
    %11 = arith.addf %8, %10 : vector<64x32xf32>
    %cst_9 = arith.constant 0.000000e+00 : f32
    %12 = vector.broadcast %cst_9 : f32 to vector<64x32xf32>
    %13 = arith.maximumf %11, %12 : vector<64x32xf32>
    %c0_10 = arith.constant 0 : index
    %c0_11 = arith.constant 0 : index
    %14 = vector.load %arg6[%c0_10, %c0_11] : memref<64x32xf32, #tpu.memory_space<vmem>>, vector<64x32xf32>
    tpu.vector_store %arg6[%c0_10, %c0_11], %13 {strides = array<i32>} : memref<64x32xf32, #tpu.memory_space<vmem>>, vector<64x32xf32>,
    return
  }
  func.func @transform_0(%arg0: i32) -> (i32, i32) {
    %c0_i32 = arith.constant 0 : i32
    %c0_i32_0 = arith.constant 0 : i32
    return %arg0, %c0_i32 : i32, i32
  }
  func.func @transform_1(%arg0: i32) -> (i32, i32) {
    %c0_i32 = arith.constant 0 : i32
    %c0_i32_0 = arith.constant 0 : i32
    %c0_i32_1 = arith.constant 0 : i32
    return %c0_i32, %c0_i32_0 : i32, i32
  }
  func.func @transform_2(%arg0: i32) -> (i32, i32) {
    %c0_i32 = arith.constant 0 : i32
    %c0_i32_0 = arith.constant 0 : i32
    %c0_i32_1 = arith.constant 0 : i32
    return %c0_i32, %c0_i32_0 : i32, i32
  }
  func.func @transform_3(%arg0: i32) -> (i32, i32) {
    %c0_i32 = arith.constant 0 : i32
    %c0_i32_0 = arith.constant 0 : i32
    %c0_i32_1 = arith.constant 0 : i32
    return %c0_i32, %c0_i32_0 : i32, i32
  }
  func.func @transform_4(%arg0: i32) -> (i32, i32) {
    %c0_i32 = arith.constant 0 : i32
    %c0_i32_0 = arith.constant 0 : i32
    return %arg0, %c0_i32 : i32, i32
  }
  func.func @transform_5(%arg0: i32) -> (i32, i32) {
    %c0_i32 = arith.constant 0 : i32
    %c0_i32_0 = arith.constant 0 : i32
    return %arg0, %c0_i32 : i32, i32
  }
}

</mosaic_0001>

<llo_original>
// kernel: resblock50_forward.7
$region0: #{resblock50_forward.7}
  #allocation0 [shape = 'u32[]', space=smem, size = 0x4, offset = 0x4, fixed_abs, tag = 'smem constant byte address 0x4 - core index']
  #allocation1 [shape = 'u32[144,128]{1,0:T(1,128)}', space=vmem, size = 0x12000, scoped, tag = 'internal scratch']
  %s0 = inlined_call_operand.vmem [shape: bf16[128,8], index: 0, kind: input, shape index: {}]
  %s1 = inlined_call_operand.vmem [shape: bf16[8,32], index: 1, kind: input, shape index: {}]
  %s2 = inlined_call_operand.vmem [shape: f32[1,32], index: 2, kind: input, shape index: {}]
  %s3 = inlined_call_operand.vmem [shape: f32[1,32], index: 3, kind: input, shape index: {}]
  %s4 = inlined_call_operand.vmem [shape: bf16[128,32], index: 4, kind: input, shape index: {}]
  %s5 = inlined_call_operand.hbm [shape: f32[128,32], index: 5, kind: output, shape index: {}]
  %s6 = sld [smem:[#allocation0]]
  $region53: #{resblock50_forward.7} parent=0
    _
  %s8 = ssub.s32 1, %s6
  %s9 = scalar_select 0, %s8, %s6
  $region1: #{resblock50_forward.7} parent=0
    #allocation2 [shape = 'u8[65536]{0}', space=vmem, size = 0x10000, scoped, tag = 'output window, operand 0']
    #allocation3 [shape = 's32[2]{0}', space=sflag, size = 0x8, scoped, tag = 'scoped memory for resblock50_forward.7']
    %10 = vsyncpa [#allocation3], 0
    %s11 = scalar_lea.sflag [#allocation3], 1
    %12 = vsyncpa %s11, 0
    loop: start=0, step=1, limit=4
    $region2: #{resblock50_forward.7} parent=1 // loop_pre_header
      _
    $region3: #{resblock50_forward.7} parent=1 // loop_header
      %s14 = sphi 0, %s18
      %p15 = scmp.ge.s32.totalorder %s14, 4
      %s24 = sphi 0, %s26
      %s27 = sphi 0, %s24
      %s28 = sphi 0, %s27
      %s44 = sphi 0, %s28
      %s48 = sphi 0, %s48
      %s50 = sphi 0, %s48
      %s51 = sphi 0, %s50
      %s65 = sphi 0, %s51
      %s69 = sphi 0, %s69
      %s71 = sphi 0, %s69
      %s72 = sphi 0, %s71
      %s86 = sphi 0, %s72
      %s90 = sphi 0, %s90
      %s92 = sphi 0, %s90
      %s93 = sphi 0, %s92
      %s107 = sphi 0, %s93
      %s113 = sphi 0, %s115
      %s116 = sphi 0, %s113
      %s117 = sphi 0, %s116
      %s133 = sphi 0, %s117
      %s139 = sphi 0, %s141
      %s142 = sphi 0, %s139
      %s143 = sphi 0, %s142
      %s159 = sphi 0, %s143
    $region4: #{resblock50_forward.7} parent=1 // loop_header_branch
      %17 = sbr.rel (%p15) target = $region8
    $region5: #{resblock50_forward.7} parent=1 // loop_body
      %s19 = ssub.s32 %s14, 1
      %s20 = ssub.s32 %s14, 2
      %s21 = sadd.s32 %s14, 1
      %s22 = ssub.s32 %s14, %s21
      %p23 = scmp.eq.s32.totalorder %s22, 0
      %s25 = sadd.s32 %s24, 1
      %s26 = scalar_select %p23, %s24, %s25
      %p29 = pneg %p23
      %p30 = scmp.eq.s32.totalorder %s14, 1
      %p31 = por %p29, %p30
      %p32 = scmp.ne.s32.totalorder %s24, %s27
      %p33 = scmp.eq.s32.totalorder %s14, 0
      %p34 = por %p32, %p33
      %p35 = scmp.ne.s32.totalorder %s24, %s27
      %p36 = scmp.eq.s32.totalorder %s19, 1
      %p37 = por %p35, %p36
      %p38 = scmp.ne.s32.totalorder %s27, %s28
      %p39 = scmp.eq.s32.totalorder %s19, 0
      %p40 = por %p38, %p39
      %p41 = scmp.ne.s32.totalorder %s27, %s28
      %p42 = scmp.eq.s32.totalorder %s20, 1
      %p43 = por %p41, %p42
      %p45 = scmp.ne.s32.totalorder %s28, %s44
      %p46 = scmp.eq.s32.totalorder %s20, 0
      %p47 = por %p45, %p46
      %s49 = sadd.s32 %s48, 1
      %p52 = scmp.eq.s32.totalorder %s14, 1
      %p53 = scmp.ne.s32.totalorder %s48, %s50
      %p54 = scmp.eq.s32.totalorder %s14, 0
      %p55 = por %p53, %p54
      %p56 = scmp.ne.s32.totalorder %s48, %s50
      %p57 = scmp.eq.s32.totalorder %s19, 1
      %p58 = por %p56, %p57
      %p59 = scmp.ne.s32.totalorder %s50, %s51
      %p60 = scmp.eq.s32.totalorder %s19, 0
      %p61 = por %p59, %p60
      %p62 = scmp.ne.s32.totalorder %s50, %s51
      %p63 = scmp.eq.s32.totalorder %s20, 1
      %p64 = por %p62, %p63
      %p66 = scmp.ne.s32.totalorder %s51, %s65
      %p67 = scmp.eq.s32.totalorder %s20, 0
      %p68 = por %p66, %p67
      %s70 = sadd.s32 %s69, 1
      %p73 = scmp.eq.s32.totalorder %s14, 1
      %p74 = scmp.ne.s32.totalorder %s69, %s71
      %p75 = scmp.eq.s32.totalorder %s14, 0
      %p76 = por %p74, %p75
      %p77 = scmp.ne.s32.totalorder %s69, %s71
      %p78 = scmp.eq.s32.totalorder %s19, 1
      %p79 = por %p77, %p78
      %p80 = scmp.ne.s32.totalorder %s71, %s72
      %p81 = scmp.eq.s32.totalorder %s19, 0
      %p82 = por %p80, %p81
      %p83 = scmp.ne.s32.totalorder %s71, %s72
      %p84 = scmp.eq.s32.totalorder %s20, 1
      %p85 = por %p83, %p84
      %p87 = scmp.ne.s32.totalorder %s72, %s86
      %p88 = scmp.eq.s32.totalorder %s20, 0
      %p89 = por %p87, %p88
      %s91 = sadd.s32 %s90, 1
      %p94 = scmp.eq.s32.totalorder %s14, 1
      %p95 = scmp.ne.s32.totalorder %s90, %s92
      %p96 = scmp.eq.s32.totalorder %s14, 0
      %p97 = por %p95, %p96
      %p98 = scmp.ne.s32.totalorder %s90, %s92
      %p99 = scmp.eq.s32.totalorder %s19, 1
      %p100 = por %p98, %p99
      %p101 = scmp.ne.s32.totalorder %s92, %s93
      %p102 = scmp.eq.s32.totalorder %s19, 0
      %p103 = por %p101, %p102
      %p104 = scmp.ne.s32.totalorder %s92, %s93
      %p105 = scmp.eq.s32.totalorder %s20, 1
      %p106 = por %p104, %p105
      %p108 = scmp.ne.s32.totalorder %s93, %s107
      %p109 = scmp.eq.s32.totalorder %s20, 0
      %p110 = por %p108, %p109
      %s111 = ssub.s32 %s14, %s21
      %p112 = scmp.eq.s32.totalorder %s111, 0
      %s114 = sadd.s32 %s113, 1
      %s115 = scalar_select %p112, %s113, %s114
      %p118 = pneg %p112
      %p119 = scmp.eq.s32.totalorder %s14, 1
      %p120 = por %p118, %p119
      %p121 = scmp.ne.s32.totalorder %s113, %s116
      %p122 = scmp.eq.s32.totalorder %s14, 0
      %p123 = por %p121, %p122
      %p124 = scmp.ne.s32.totalorder %s113, %s116
      %p125 = scmp.eq.s32.totalorder %s19, 1
      %p126 = por %p124, %p125
      %p127 = scmp.ne.s32.totalorder %s116, %s117
      %p128 = scmp.eq.s32.totalorder %s19, 0
      %p129 = por %p127, %p128
      %p130 = scmp.ne.s32.totalorder %s116, %s117
      %p131 = scmp.eq.s32.totalorder %s20, 1
      %p132 = por %p130, %p131
      %p134 = scmp.ne.s32.totalorder %s117, %s133
      %p135 = scmp.eq.s32.totalorder %s20, 0
      %p136 = por %p134, %p135
      %s137 = ssub.s32 %s14, %s21
      %p138 = scmp.eq.s32.totalorder %s137, 0
      %s140 = sadd.s32 %s139, 1
      %s141 = scalar_select %p138, %s139, %s140
      %p144 = pneg %p138
      %p145 = scmp.eq.s32.totalorder %s14, 1
      %p146 = por %p144, %p145
      %p147 = scmp.ne.s32.totalorder %s139, %s142
      %p148 = scmp.eq.s32.totalorder %s14, 0
      %p149 = por %p147, %p148
      %p150 = scmp.ne.s32.totalorder %s139, %s142
      %p151 = scmp.eq.s32.totalorder %s19, 1
      %p152 = por %p150, %p151
      %p153 = scmp.ne.s32.totalorder %s142, %s143
      %p154 = scmp.eq.s32.totalorder %s19, 0
      %p155 = por %p153, %p154
      %p156 = scmp.ne.s32.totalorder %s142, %s143
      %p157 = scmp.eq.s32.totalorder %s20, 1
      %p158 = por %p156, %p157
      %p160 = scmp.ne.s32.totalorder %s143, %s159
      %p161 = scmp.eq.s32.totalorder %s20, 0
      %p162 = por %p160, %p161
      %p163 = scmp.le.s32.totalorder 1, %s14
      %p164 = scmp.lt.s32.totalorder %s14, 3
      %p165 = pnand %p163, %p164
      %p166 = pneg %p165
      // Predicated region
      $region9: #{resblock50_forward.7} parent=5 // pred_check
        _
      $region10: #{resblock50_forward.7} parent=5 // pred_check_branch
        %168 = sbr.rel (%p165) target = $region12
      $region11: #{resblock50_forward.7} parent=5 // pred_region
        %s169 = ssub.s32 %s14, 1
        // Predicated region
        $region13: #{resblock50_forward.7} parent=11 // pred_check
          %p170 = pneg %p61
        $region14: #{resblock50_forward.7} parent=11 // pred_check_branch
          %172 = sbr.rel (%p170) target = $region16
        $region15: #{resblock50_forward.7} parent=11 // pred_region
          _
        $region16: #{resblock50_forward.7} parent=11 // pred_fallthru
          _
        // Predicated region
        $region17: #{resblock50_forward.7} parent=11 // pred_check
          %p173 = pneg %p82
        $region18: #{resblock50_forward.7} parent=11 // pred_check_branch
          %175 = sbr.rel (%p173) target = $region20
        $region19: #{resblock50_forward.7} parent=11 // pred_region
          _
        $region20: #{resblock50_forward.7} parent=11 // pred_fallthru
          _
        // Predicated region
        $region21: #{resblock50_forward.7} parent=11 // pred_check
          %p176 = pneg %p103
        $region22: #{resblock50_forward.7} parent=11 // pred_check_branch
          %178 = sbr.rel (%p176) target = $region24
        $region23: #{resblock50_forward.7} parent=11 // pred_region
          _
        $region24: #{resblock50_forward.7} parent=11 // pred_fallthru
          _
      $region12: #{resblock50_forward.7} parent=5 // pred_fallthru
        _
      %p179 = scmp.lt.s32.totalorder %s14, 2
      // Predicated region
      $region25: #{resblock50_forward.7} parent=5 // pred_check
        %p180 = pneg %p179
      $region26: #{resblock50_forward.7} parent=5 // pred_check_branch
        %182 = sbr.rel (%p180) target = $region28
      $region27: #{resblock50_forward.7} parent=5 // pred_region
        // Predicated region
        $region29: #{resblock50_forward.7} parent=27 // pred_check
          %p183 = pneg %p34
        $region30: #{resblock50_forward.7} parent=27 // pred_check_branch
          %185 = sbr.rel (%p183) target = $region32
        $region31: #{resblock50_forward.7} parent=27 // pred_region
          %s186 = smul.u32 8, %s14
          %p187 = scmp.lt.s32.totalorder %s186, 15
          %s188 = scalar_select %p187, %s186, 15
          %s189 = smul.addr %s188, 4
          %s190 = scalar_lea.vmem %s0, %s189
          %s191 = smul.u32 8, %s14
        $region32: #{resblock50_forward.7} parent=27 // pred_fallthru
          _
        // Predicated region
        $region33: #{resblock50_forward.7} parent=27 // pred_check
          %p192 = pneg %p123
        $region34: #{resblock50_forward.7} parent=27 // pred_check_branch
          %194 = sbr.rel (%p192) target = $region36
        $region35: #{resblock50_forward.7} parent=27 // pred_region
          %s195 = smul.u32 8, %s14
          %p196 = scmp.lt.s32.totalorder %s195, 15
          %s197 = scalar_select %p196, %s195, 15
          %s198 = smul.addr %s197, 4
          %s199 = scalar_lea.vmem %s4, %s198
          %s200 = smul.u32 8, %s14
        $region36: #{resblock50_forward.7} parent=27 // pred_fallthru
          _
      $region28: #{resblock50_forward.7} parent=5 // pred_fallthru
        _
      %p201 = scmp.le.s32.totalorder 1, %s14
      %p202 = scmp.lt.s32.totalorder %s14, 3
      %p203 = pnand %p201, %p202
      %p204 = pneg %p203
      // Predicated region
      $region37: #{resblock50_forward.7} parent=5 // pred_check
        _
      $region38: #{resblock50_forward.7} parent=5 // pred_check_branch
        %206 = sbr.rel (%p203) target = $region40
      $region39: #{resblock50_forward.7} parent=5 // pred_region
        %s207 = ssub.s32 %s14, 1
        %s208 = smul.u32 8, %s19
        %p209 = scmp.lt.s32.totalorder %s208, 15
        %s210 = scalar_select %p209, %s208, 15
        %s211 = smul.addr %s210, 4
        %s212 = scalar_lea.vmem %s0, %s211
        %p213 = pneg %p40
        %p214 = pneg %p37
        %p215 = pneg %p61
        %p216 = pneg %p58
        %p217 = pneg %p82
        %p218 = pneg %p79
        %p219 = pneg %p103
        %p220 = pneg %p100
        %s221 = smul.u32 8, %s19
        %p222 = scmp.lt.s32.totalorder %s221, 15
        %s223 = scalar_select %p222, %s221, 15
        %s224 = smul.addr %s223, 4
        %s225 = scalar_lea.vmem %s4, %s224
        %p226 = pneg %p129
        %p227 = pneg %p126
        %p228 = pneg %p155
        %p229 = pneg %p152
        %s230 = sand.u32 %s142, 1
        %s231 = scalar_lea.sflag [#allocation3], %s230
        %s232 = sand.u32 %s142, 1
        %s233 = smul.addr %s232, 64
        %s234 = scalar_lea.vmem [#allocation2], %s233
        %s235 = smul.u32 8, %s19
        %p236 = scmp.lt.s32.totalorder %s235, 15
        %s237 = scalar_select %p236, %s235, 15
        %s238 = smul.addr %s237, 4
        %s239 = scalar_lea.vmem %s0, %s238
        %s240 = smul.u32 8, %s19
        %s241 = smul.u32 8, %s19
        %p242 = scmp.lt.s32.totalorder %s241, 15
        %s243 = scalar_select %p242, %s241, 15
        %s244 = smul.addr %s243, 4
        %s245 = scalar_lea.vmem %s4, %s244
        %s246 = smul.u32 8, %s19
        %s247 = smul.u32 8, %s19
        %v249 = vld [vmem:[%s239] sm:$0xf]
        %v250 = vld [vmem:[%s239 + $0x4] sm:$0xf]
        %v251 = vld [vmem:[%s239 + $0x8] sm:$0xf]
        %v252 = vld [vmem:[%s239 + $0xc] sm:$0xf]
        %v253 = vld [vmem:[%s239 + $0x10] sm:$0xf]
        %v254 = vld [vmem:[%s239 + $0x14] sm:$0xf]
        %v255 = vld [vmem:[%s239 + $0x18] sm:$0xf]
        %v256 = vld [vmem:[%s239 + $0x1c] sm:$0xf]
        %v257 = vld [vmem:[%s1] sm:$0xf]
        %v266 = vunpack.c.l.b16 %v249
        %v267 = vunpack.c.l.b16 %v250
        %v268 = vunpack.c.l.b16 %v251
        %v269 = vunpack.c.l.b16 %v252
        %v270 = vunpack.c.l.b16 %v253
        %v271 = vunpack.c.l.b16 %v254
        %v272 = vunpack.c.l.b16 %v255
        %v273 = vunpack.c.l.b16 %v256
        %v274 = vpack.c.b16 %v267, %v266
        %v275 = vpack.c.b16 %v269, %v268
        %v276 = vpack.c.b16 %v271, %v270
        %v277 = vpack.c.b16 %v273, %v272
        %vm278 = vcmask 64512
        %v280 = vsel %vm278, %v274, 0
        %v283 = vsel %vm278, %v275, 0
        %v286 = vsel %vm278, %v276, 0
        %v289 = vsel %vm278, %v277, 0
        %vm291 = vcmask 1043456
        %v293 = vsel %vm291, %v257, 0
        %295 = vmatprep.subr.bf16.mxu0 0
        %296 = vmatpush1.bf16.msra.mxu0 %v293
        %297 = vmatprep.subr.bf16.mxu0 0
        %298 = vmatpush1.bf16.msra.mxu0 0
        %299 = vmatprep.subr.bf16.mxu0 0
        %300 = vmatpush1.bf16.msra.mxu0 0
        %301 = vmatprep.subr.bf16.mxu0 0
        %302 = vmatpush1.bf16.msra.mxu0 0
        %303 = vmatprep.subr.bf16.mxu0 0
        %304 = vmatpush1.bf16.msra.mxu0 0
        %305 = vmatprep.subr.bf16.mxu0 0
        %306 = vmatpush1.bf16.msra.mxu0 0
        %307 = vmatprep.subr.bf16.mxu0 0
        %308 = vmatpush1.bf16.msra.mxu0 0
        %309 = vmatprep.subr.bf16.mxu0 0
        %310 = vmatpush1.bf16.msra.mxu0 0
        %311 = vmatprep.subr.bf16.mxu0 0
        %312 = vmatpush1.bf16.msra.mxu0 0
        %313 = vmatprep.subr.bf16.mxu0 0
        %314 = vmatpush1.bf16.msra.mxu0 0
        %315 = vmatprep.subr.bf16.mxu0 0
        %316 = vmatpush1.bf16.msra.mxu0 0
        %317 = vmatprep.subr.bf16.mxu0 0
        %318 = vmatpush1.bf16.msra.mxu0 0
        %319 = vmatprep.subr.bf16.mxu0 0
        %320 = vmatpush1.bf16.msra.mxu0 0
        %321 = vmatprep.subr.bf16.mxu0 0
        %322 = vmatpush1.bf16.msra.mxu0 0
        %323 = vmatprep.subr.bf16.mxu0 0
        %324 = vmatpush1.bf16.msra.mxu0 0
        %325 = vmatprep.subr.bf16.mxu0 0
        %326 = vmatpush1.bf16.msra.mxu0 0
        %327 = vmatprep.mubr.bf16.mxu0 0
        %328 = vmatmul.mubr.bf16.gmra.mrb[0].mxu0 %v280
        %v329 = vpop.f32.mrb[0].mxu0
        %v330 = vadd.f32 0.0, %v329
        %v331 = vpop.f32.mrb[0].mxu0
        %v332 = vpop.f32.mrb[0].mxu0
        %v333 = vadd.f32 0.0, %v332
        %v334 = vpop.f32.mrb[0].mxu0
        %335 = vmatprep.mubr.bf16.mxu0 0
        %336 = vmatmul.mubr.bf16.gmra.mrb[0].mxu0 %v283
        %v337 = vpop.f32.mrb[0].mxu0
        %v338 = vadd.f32 0.0, %v337
        %v339 = vpop.f32.mrb[0].mxu0
        %v340 = vpop.f32.mrb[0].mxu0
        %v341 = vadd.f32 0.0, %v340
        %v342 = vpop.f32.mrb[0].mxu0
        %343 = vmatprep.mubr.bf16.mxu0 0
        %344 = vmatmul.mubr.bf16.gmra.mrb[0].mxu0 %v286
        %v345 = vpop.f32.mrb[0].mxu0
        %v346 = vadd.f32 0.0, %v345
        %v347 = vpop.f32.mrb[0].mxu0
        %v348 = vpop.f32.mrb[0].mxu0
        %v349 = vadd.f32 0.0, %v348
        %v350 = vpop.f32.mrb[0].mxu0
        %351 = vmatprep.mubr.bf16.mxu0 0
        %352 = vmatmul.mubr.bf16.gmra.mrb[0].mxu0 %v289
        %v353 = vpop.f32.mrb[0].mxu0
        %v354 = vadd.f32 0.0, %v353
        %v355 = vpop.f32.mrb[0].mxu0
        %v356 = vpop.f32.mrb[0].mxu0
        %v357 = vadd.f32 0.0, %v356
        %v358 = vpop.f32.mrb[0].mxu0
        %359 = vdwg.mxu0
        %v360 = vld [vmem:[%s2] sm:$0x1]
        %v362 = vlaneseq
        %v363 = vshrl.u32 %v362, 7
        %v364 = vsub.s32 0, %v363
        %v365 = vrot.slane %v360, %v364
        %v367 = vmul.f32 %v330, %v365
        %v368 = vmul.f32 %v333, %v365
        %v369 = vmul.f32 %v338, %v365
        %v370 = vmul.f32 %v341, %v365
        %v371 = vmul.f32 %v346, %v365
        %v372 = vmul.f32 %v349, %v365
        %v373 = vmul.f32 %v354, %v365
        %v374 = vmul.f32 %v357, %v365
        %v375 = vld [vmem:[%s3] sm:$0x1]
        %v377 = vlaneseq
        %v378 = vshrl.u32 %v377, 7
        %v379 = vsub.s32 0, %v378
        %v380 = vrot.slane %v375, %v379
        %v382 = vadd.f32 %v367, %v380
        %v383 = vadd.f32 %v368, %v380
        %v384 = vadd.f32 %v369, %v380
        %v385 = vadd.f32 %v370, %v380
        %v386 = vadd.f32 %v371, %v380
        %v387 = vadd.f32 %v372, %v380
        %v388 = vadd.f32 %v373, %v380
        %v389 = vadd.f32 %v374, %v380
        %v390 = vld [vmem:[%s245] sm:$0xf]
        %v391 = vld [vmem:[%s245 + $0x4] sm:$0xf]
        %v392 = vld [vmem:[%s245 + $0x8] sm:$0xf]
        %v393 = vld [vmem:[%s245 + $0xc] sm:$0xf]
        %v394 = vld [vmem:[%s245 + $0x10] sm:$0xf]
        %v395 = vld [vmem:[%s245 + $0x14] sm:$0xf]
        %v396 = vld [vmem:[%s245 + $0x18] sm:$0xf]
        %v397 = vld [vmem:[%s245 + $0x1c] sm:$0xf]
        %v398 = vunpack.c.l.bf16 %v390
        %v399 = vunpack.c.l.bf16 %v391
        %v400 = vunpack.c.l.bf16 %v392
        %v401 = vunpack.c.l.bf16 %v393
        %v402 = vunpack.c.l.bf16 %v394
        %v403 = vunpack.c.l.bf16 %v395
        %v404 = vunpack.c.l.bf16 %v396
        %v405 = vunpack.c.l.bf16 %v397
        %v406 = vadd.f32 %v382, %v398
        %v407 = vadd.f32 %v383, %v399
        %v408 = vadd.f32 %v384, %v400
        %v409 = vadd.f32 %v385, %v401
        %v410 = vadd.f32 %v386, %v402
        %v411 = vadd.f32 %v387, %v403
        %v412 = vadd.f32 %v388, %v404
        %v413 = vadd.f32 %v389, %v405
        %v414 = vmax.f32 %v406, 0.0
        %v415 = vmax.f32 %v407, 0.0
        %v416 = vmax.f32 %v408, 0.0
        %v417 = vmax.f32 %v409, 0.0
        %v418 = vmax.f32 %v410, 0.0
        %v419 = vmax.f32 %v411, 0.0
        %v420 = vmax.f32 %v412, 0.0
        %v421 = vmax.f32 %v413, 0.0
        %vm422 = vcmask 261120
        %423 = vst.msk [vmem:[%s234] sm:$0xff] %vm422, %v414
        %424 = vst.msk [vmem:[%s234 + $0x8] sm:$0xff] %vm422, %v415
        %425 = vst.msk [vmem:[%s234 + $0x10] sm:$0xff] %vm422, %v416
        %426 = vst.msk [vmem:[%s234 + $0x18] sm:$0xff] %vm422, %v417
        %427 = vst.msk [vmem:[%s234 + $0x20] sm:$0xff] %vm422, %v418
        %428 = vst.msk [vmem:[%s234 + $0x28] sm:$0xff] %vm422, %v419
        %429 = vst.msk [vmem:[%s234 + $0x30] sm:$0xff] %vm422, %v420
        %430 = vst.msk [vmem:[%s234 + $0x38] sm:$0xff] %vm422, %v421
        %s431 = sand.u32 %s142, 1
        %s432 = scalar_lea.sflag [#allocation3], %s431
        %s433 = sand.u32 %s142, 1
        %s434 = smul.addr %s433, 64
        %s435 = scalar_lea.vmem [#allocation2], %s434
        // Predicated region
        $region41: #{resblock50_forward.7} parent=39 // pred_check
          %p436 = pneg %p152
        $region42: #{resblock50_forward.7} parent=39 // pred_check_branch
          %438 = sbr.rel (%p436) target = $region44
        $region43: #{resblock50_forward.7} parent=39 // pred_region
          %s439 = smul.u32 8, %s19
          %s441 = ssub.s32 1024, 1024
          %442 = vsyncadd %s432, %s441
          %s443 = smul.addr %s439, 128
          %s444 = scalar_lea.hbm %s5, %s443
          %s445 = sshll.u32 %s435, 4
          %s446 = int_to_ptr.vmem [resolvable:$true] %s445
          %451 = dma.vmem_to_hbm [thread:$0]  %s446, 1024, %s444, %s432, 128, 128, 8
        $region44: #{resblock50_forward.7} parent=39 // pred_fallthru
          _
      $region40: #{resblock50_forward.7} parent=5 // pred_fallthru
        _
      %p452 = scmp.le.s32.totalorder 2, %s14
      // Predicated region
      $region45: #{resblock50_forward.7} parent=5 // pred_check
        %p453 = pneg %p452
      $region46: #{resblock50_forward.7} parent=5 // pred_check_branch
        %455 = sbr.rel (%p453) target = $region48
      $region47: #{resblock50_forward.7} parent=5 // pred_region
        %s456 = ssub.s32 %s14, 2
        // Predicated region
        $region49: #{resblock50_forward.7} parent=47 // pred_check
          %p457 = pneg %p158
        $region50: #{resblock50_forward.7} parent=47 // pred_check_branch
          %459 = sbr.rel (%p457) target = $region52
        $region51: #{resblock50_forward.7} parent=47 // pred_region
          %s460 = sand.u32 %s143, 1
          %s461 = scalar_lea.sflag [#allocation3], %s460
          %s462 = sand.u32 %s143, 1
          %s463 = smul.addr %s462, 64
          %s464 = scalar_lea.vmem [#allocation2], %s463
          %465 = dma.done %s461, 1024
        $region52: #{resblock50_forward.7} parent=47 // pred_fallthru
          _
      $region48: #{resblock50_forward.7} parent=5 // pred_fallthru
        _
    $region6: #{resblock50_forward.7} parent=1 // loop_footer
      %s18 = sadd.s32 1, %s14
    $region7: #{resblock50_forward.7} parent=1 // loop_footer_branch
      %13 = sbr.rel target = $region3
    $region8: #{resblock50_forward.7} parent=1 // loop_exit
      _
    %466 = vsyncpa [#allocation3], 1
    %s467 = scalar_lea.sflag [#allocation3], 1
    %468 = vsyncpa %s467, 1

// kernel: resblock50_forward.4
$region0: #{resblock50_forward.4}
  #allocation0 [shape = 'u32[]', space=smem, size = 0x4, offset = 0x4, fixed_abs, tag = 'smem constant byte address 0x4 - core index']
  #allocation1 [shape = 'u32[144,128]{1,0:T(1,128)}', space=vmem, size = 0x12000, scoped, tag = 'internal scratch']
  %s0 = inlined_call_operand.vmem [shape: bf16[128,4], index: 0, kind: input, shape index: {}]
  %s1 = inlined_call_operand.vmem [shape: bf16[4,8], index: 1, kind: input, shape index: {}]
  %s2 = inlined_call_operand.vmem [shape: f32[1,8], index: 2, kind: input, shape index: {}]
  %s3 = inlined_call_operand.vmem [shape: f32[1,8], index: 3, kind: input, shape index: {}]
  %s4 = inlined_call_operand.vmem [shape: bf16[128,8], index: 4, kind: output, shape index: {}]
  %s5 = sld [smem:[#allocation0]]
  $region49: #{resblock50_forward.4} parent=0
    _
  %s7 = ssub.s32 1, %s5
  %s8 = scalar_select 0, %s7, %s5
  loop: start=0, step=1, limit=4
  $region2: #{resblock50_forward.4} parent=0 // loop_pre_header
    _
  $region3: #{resblock50_forward.4} parent=0 // loop_header
    %s10 = sphi 0, %s14
    %p11 = scmp.ge.s32.totalorder %s10, 4
    %s20 = sphi 0, %s22
    %s23 = sphi 0, %s20
    %s24 = sphi 0, %s23
    %s40 = sphi 0, %s24
    %s44 = sphi 0, %s44
    %s46 = sphi 0, %s44
    %s47 = sphi 0, %s46
    %s61 = sphi 0, %s47
    %s65 = sphi 0, %s65
    %s67 = sphi 0, %s65
    %s68 = sphi 0, %s67
    %s82 = sphi 0, %s68
    %s86 = sphi 0, %s86
    %s88 = sphi 0, %s86
    %s89 = sphi 0, %s88
    %s103 = sphi 0, %s89
    %s109 = sphi 0, %s111
    %s112 = sphi 0, %s109
    %s113 = sphi 0, %s112
    %s129 = sphi 0, %s113
  $region4: #{resblock50_forward.4} parent=0 // loop_header_branch
    %13 = sbr.rel (%p11) target = $region8
  $region5: #{resblock50_forward.4} parent=0 // loop_body
    %s15 = ssub.s32 %s10, 1
    %s16 = ssub.s32 %s10, 2
    %s17 = sadd.s32 %s10, 1
    %s18 = ssub.s32 %s10, %s17
    %p19 = scmp.eq.s32.totalorder %s18, 0
    %s21 = sadd.s32 %s20, 1
    %s22 = scalar_select %p19, %s20, %s21
    %p25 = pneg %p19
    %p26 = scmp.eq.s32.totalorder %s10, 1
    %p27 = por %p25, %p26
    %p28 = scmp.ne.s32.totalorder %s20, %s23
    %p29 = scmp.eq.s32.totalorder %s10, 0
    %p30 = por %p28, %p29
    %p31 = scmp.ne.s32.totalorder %s20, %s23
    %p32 = scmp.eq.s32.totalorder %s15, 1
    %p33 = por %p31, %p32
    %p34 = scmp.ne.s32.totalorder %s23, %s24
    %p35 = scmp.eq.s32.totalorder %s15, 0
    %p36 = por %p34, %p35
    %p37 = scmp.ne.s32.totalorder %s23, %s24
    %p38 = scmp.eq.s32.totalorder %s16, 1
    %p39 = por %p37, %p38
    %p41 = scmp.ne.s32.totalorder %s24, %s40
    %p42 = scmp.eq.s32.totalorder %s16, 0
    %p43 = por %p41, %p42
    %s45 = sadd.s32 %s44, 1
    %p48 = scmp.eq.s32.totalorder %s10, 1
    %p49 = scmp.ne.s32.totalorder %s44, %s46
    %p50 = scmp.eq.s32.totalorder %s10, 0
    %p51 = por %p49, %p50
    %p52 = scmp.ne.s32.totalorder %s44, %s46
    %p53 = scmp.eq.s32.totalorder %s15, 1
    %p54 = por %p52, %p53
    %p55 = scmp.ne.s32.totalorder %s46, %s47
    %p56 = scmp.eq.s32.totalorder %s15, 0
    %p57 = por %p55, %p56
    %p58 = scmp.ne.s32.totalorder %s46, %s47
    %p59 = scmp.eq.s32.totalorder %s16, 1
    %p60 = por %p58, %p59
    %p62 = scmp.ne.s32.totalorder %s47, %s61
    %p63 = scmp.eq.s32.totalorder %s16, 0
    %p64 = por %p62, %p63
    %s66 = sadd.s32 %s65, 1
    %p69 = scmp.eq.s32.totalorder %s10, 1
    %p70 = scmp.ne.s32.totalorder %s65, %s67
    %p71 = scmp.eq.s32.totalorder %s10, 0
    %p72 = por %p70, %p71
    %p73 = scmp.ne.s32.totalorder %s65, %s67
    %p74 = scmp.eq.s32.totalorder %s15, 1
    %p75 = por %p73, %p74
    %p76 = scmp.ne.s32.totalorder %s67, %s68
    %p77 = scmp.eq.s32.totalorder %s15, 0
    %p78 = por %p76, %p77
    %p79 = scmp.ne.s32.totalorder %s67, %s68
    %p80 = scmp.eq.s32.totalorder %s16, 1
    %p81 = por %p79, %p80
    %p83 = scmp.ne.s32.totalorder %s68, %s82
    %p84 = scmp.eq.s32.totalorder %s16, 0
    %p85 = por %p83, %p84
    %s87 = sadd.s32 %s86, 1
    %p90 = scmp.eq.s32.totalorder %s10, 1
    %p91 = scmp.ne.s32.totalorder %s86, %s88
    %p92 = scmp.eq.s32.totalorder %s10, 0
    %p93 = por %p91, %p92
    %p94 = scmp.ne.s32.totalorder %s86, %s88
    %p95 = scmp.eq.s32.totalorder %s15, 1
    %p96 = por %p94, %p95
    %p97 = scmp.ne.s32.totalorder %s88, %s89
    %p98 = scmp.eq.s32.totalorder %s15, 0
    %p99 = por %p97, %p98
    %p100 = scmp.ne.s32.totalorder %s88, %s89
    %p101 = scmp.eq.s32.totalorder %s16, 1
    %p102 = por %p100, %p101
    %p104 = scmp.ne.s32.totalorder %s89, %s103
    %p105 = scmp.eq.s32.totalorder %s16, 0
    %p106 = por %p104, %p105
    %s107 = ssub.s32 %s10, %s17
    %p108 = scmp.eq.s32.totalorder %s107, 0
    %s110 = sadd.s32 %s109, 1
    %s111 = scalar_select %p108, %s109, %s110
    %p114 = pneg %p108
    %p115 = scmp.eq.s32.totalorder %s10, 1
    %p116 = por %p114, %p115
    %p117 = scmp.ne.s32.totalorder %s109, %s112
    %p118 = scmp.eq.s32.totalorder %s10, 0
    %p119 = por %p117, %p118
    %p120 = scmp.ne.s32.totalorder %s109, %s112
    %p121 = scmp.eq.s32.totalorder %s15, 1
    %p122 = por %p120, %p121
    %p123 = scmp.ne.s32.totalorder %s112, %s113
    %p124 = scmp.eq.s32.totalorder %s15, 0
    %p125 = por %p123, %p124
    %p126 = scmp.ne.s32.totalorder %s112, %s113
    %p127 = scmp.eq.s32.totalorder %s16, 1
    %p128 = por %p126, %p127
    %p130 = scmp.ne.s32.totalorder %s113, %s129
    %p131 = scmp.eq.s32.totalorder %s16, 0
    %p132 = por %p130, %p131
    %p133 = scmp.le.s32.totalorder 1, %s10
    %p134 = scmp.lt.s32.totalorder %s10, 3
    %p135 = pnand %p133, %p134
    %p136 = pneg %p135
    // Predicated region
    $region9: #{resblock50_forward.4} parent=5 // pred_check
      _
    $region10: #{resblock50_forward.4} parent=5 // pred_check_branch
      %138 = sbr.rel (%p135) target = $region12
    $region11: #{resblock50_forward.4} parent=5 // pred_region
      %s139 = ssub.s32 %s10, 1
      // Predicated region
      $region13: #{resblock50_forward.4} parent=11 // pred_check
        %p140 = pneg %p57
      $region14: #{resblock50_forward.4} parent=11 // pred_check_branch
        %142 = sbr.rel (%p140) target = $region16
      $region15: #{resblock50_forward.4} parent=11 // pred_region
        _
      $region16: #{resblock50_forward.4} parent=11 // pred_fallthru
        _
      // Predicated region
      $region17: #{resblock50_forward.4} parent=11 // pred_check
        %p143 = pneg %p78
      $region18: #{resblock50_forward.4} parent=11 // pred_check_branch
        %145 = sbr.rel (%p143) target = $region20
      $region19: #{resblock50_forward.4} parent=11 // pred_region
        _
      $region20: #{resblock50_forward.4} parent=11 // pred_fallthru
        _
      // Predicated region
      $region21: #{resblock50_forward.4} parent=11 // pred_check
        %p146 = pneg %p99
      $region22: #{resblock50_forward.4} parent=11 // pred_check_branch
        %148 = sbr.rel (%p146) target = $region24
      $region23: #{resblock50_forward.4} parent=11 // pred_region
        _
      $region24: #{resblock50_forward.4} parent=11 // pred_fallthru
        _
    $region12: #{resblock50_forward.4} parent=5 // pred_fallthru
      _
    %p149 = scmp.lt.s32.totalorder %s10, 2
    // Predicated region
    $region25: #{resblock50_forward.4} parent=5 // pred_check
      %p150 = pneg %p149
    $region26: #{resblock50_forward.4} parent=5 // pred_check_branch
      %152 = sbr.rel (%p150) target = $region28
    $region27: #{resblock50_forward.4} parent=5 // pred_region
      // Predicated region
      $region29: #{resblock50_forward.4} parent=27 // pred_check
        %p153 = pneg %p30
      $region30: #{resblock50_forward.4} parent=27 // pred_check_branch
        %155 = sbr.rel (%p153) target = $region32
      $region31: #{resblock50_forward.4} parent=27 // pred_region
        %s156 = smul.u32 8, %s10
        %p157 = scmp.lt.s32.totalorder %s156, 15
        %s158 = scalar_select %p157, %s156, 15
        %s159 = smul.addr %s158, 4
        %s160 = scalar_lea.vmem %s0, %s159
        %s161 = smul.u32 8, %s10
      $region32: #{resblock50_forward.4} parent=27 // pred_fallthru
        _
    $region28: #{resblock50_forward.4} parent=5 // pred_fallthru
      _
    %p162 = scmp.le.s32.totalorder 1, %s10
    %p163 = scmp.lt.s32.totalorder %s10, 3
    %p164 = pnand %p162, %p163
    %p165 = pneg %p164
    // Predicated region
    $region33: #{resblock50_forward.4} parent=5 // pred_check
      _
    $region34: #{resblock50_forward.4} parent=5 // pred_check_branch
      %167 = sbr.rel (%p164) target = $region36
    $region35: #{resblock50_forward.4} parent=5 // pred_region
      %s168 = ssub.s32 %s10, 1
      %s169 = smul.u32 8, %s15
      %p170 = scmp.lt.s32.totalorder %s169, 15
      %s171 = scalar_select %p170, %s169, 15
      %s172 = smul.addr %s171, 4
      %s173 = scalar_lea.vmem %s0, %s172
      %p174 = pneg %p36
      %p175 = pneg %p33
      %p176 = pneg %p57
      %p177 = pneg %p54
      %p178 = pneg %p78
      %p179 = pneg %p75
      %p180 = pneg %p99
      %p181 = pneg %p96
      %p182 = pneg %p125
      %p183 = pneg %p122
      %s184 = smul.u32 8, %s15
      %p185 = scmp.lt.s32.totalorder %s184, 15
      %s186 = scalar_select %p185, %s184, 15
      %s187 = smul.addr %s186, 4
      %s188 = scalar_lea.vmem %s4, %s187
      %s189 = smul.u32 8, %s15
      %p190 = scmp.lt.s32.totalorder %s189, 15
      %s191 = scalar_select %p190, %s189, 15
      %s192 = smul.addr %s191, 4
      %s193 = scalar_lea.vmem %s0, %s192
      %s194 = smul.u32 8, %s15
      %s195 = smul.u32 8, %s15
      %p196 = scmp.lt.s32.totalorder %s195, 15
      %s197 = scalar_select %p196, %s195, 15
      %s198 = smul.addr %s197, 4
      %s199 = scalar_lea.vmem %s4, %s198
      %s200 = smul.u32 8, %s15
      %v202 = vld [vmem:[%s193] sm:$0xf]
      %v203 = vld [vmem:[%s193 + $0x4] sm:$0xf]
      %v204 = vld [vmem:[%s193 + $0x8] sm:$0xf]
      %v205 = vld [vmem:[%s193 + $0xc] sm:$0xf]
      %v206 = vld [vmem:[%s193 + $0x10] sm:$0xf]
      %v207 = vld [vmem:[%s193 + $0x14] sm:$0xf]
      %v208 = vld [vmem:[%s193 + $0x18] sm:$0xf]
      %v209 = vld [vmem:[%s193 + $0x1c] sm:$0xf]
      %v210 = vld [vmem:[%s1] sm:$0x3]
      %v219 = vunpack.c.l.b16 %v202
      %v220 = vunpack.c.l.b16 %v203
      %v221 = vunpack.c.l.b16 %v204
      %v222 = vunpack.c.l.b16 %v205
      %v223 = vunpack.c.l.b16 %v206
      %v224 = vunpack.c.l.b16 %v207
      %v225 = vunpack.c.l.b16 %v208
      %v226 = vunpack.c.l.b16 %v209
      %v227 = vpack.c.b16 %v220, %v219
      %v228 = vpack.c.b16 %v222, %v221
      %v229 = vpack.c.b16 %v224, %v223
      %v230 = vpack.c.b16 %v226, %v225
      %vm231 = vcmask 31744
      %v233 = vsel %vm231, %v227, 0
      %v236 = vsel %vm231, %v228, 0
      %v239 = vsel %vm231, %v229, 0
      %v242 = vsel %vm231, %v230, 0
      %vm244 = vcmask 1041408
      %v246 = vsel %vm244, %v210, 0
      %248 = vmatprep.subr.bf16.mxu0 0
      %249 = vmatpush1.bf16.msra.mxu0 %v246
      %250 = vmatprep.subr.bf16.mxu0 0
      %251 = vmatpush1.bf16.msra.mxu0 0
      %252 = vmatprep.subr.bf16.mxu0 0
      %253 = vmatpush1.bf16.msra.mxu0 0
      %254 = vmatprep.subr.bf16.mxu0 0
      %255 = vmatpush1.bf16.msra.mxu0 0
      %256 = vmatprep.subr.bf16.mxu0 0
      %257 = vmatpush1.bf16.msra.mxu0 0
      %258 = vmatprep.subr.bf16.mxu0 0
      %259 = vmatpush1.bf16.msra.mxu0 0
      %260 = vmatprep.subr.bf16.mxu0 0
      %261 = vmatpush1.bf16.msra.mxu0 0
      %262 = vmatprep.subr.bf16.mxu0 0
      %263 = vmatpush1.bf16.msra.mxu0 0
      %264 = vmatprep.subr.bf16.mxu0 0
      %265 = vmatpush1.bf16.msra.mxu0 0
      %266 = vmatprep.subr.bf16.mxu0 0
      %267 = vmatpush1.bf16.msra.mxu0 0
      %268 = vmatprep.subr.bf16.mxu0 0
      %269 = vmatpush1.bf16.msra.mxu0 0
      %270 = vmatprep.subr.bf16.mxu0 0
      %271 = vmatpush1.bf16.msra.mxu0 0
      %272 = vmatprep.subr.bf16.mxu0 0
      %273 = vmatpush1.bf16.msra.mxu0 0
      %274 = vmatprep.subr.bf16.mxu0 0
      %275 = vmatpush1.bf16.msra.mxu0 0
      %276 = vmatprep.subr.bf16.mxu0 0
      %277 = vmatpush1.bf16.msra.mxu0 0
      %278 = vmatprep.subr.bf16.mxu0 0
      %279 = vmatpush1.bf16.msra.mxu0 0
      %280 = vmatprep.mubr.bf16.mxu0 0
      %281 = vmatmul.mubr.bf16.gmra.mrb[0].mxu0 %v233
      %v282 = vpop.f32.mrb[0].mxu0
      %v283 = vadd.f32 0.0, %v282
      %v284 = vpop.f32.mrb[0].mxu0
      %v285 = vpop.f32.mrb[0].mxu0
      %v286 = vadd.f32 0.0, %v285
      %v287 = vpop.f32.mrb[0].mxu0
      %288 = vmatprep.mubr.bf16.mxu0 0
      %289 = vmatmul.mubr.bf16.gmra.mrb[0].mxu0 %v236
      %v290 = vpop.f32.mrb[0].mxu0
      %v291 = vadd.f32 0.0, %v290
      %v292 = vpop.f32.mrb[0].mxu0
      %v293 = vpop.f32.mrb[0].mxu0
      %v294 = vadd.f32 0.0, %v293
      %v295 = vpop.f32.mrb[0].mxu0
      %296 = vmatprep.mubr.bf16.mxu0 0
      %297 = vmatmul.mubr.bf16.gmra.mrb[0].mxu0 %v239
      %v298 = vpop.f32.mrb[0].mxu0
      %v299 = vadd.f32 0.0, %v298
      %v300 = vpop.f32.mrb[0].mxu0
      %v301 = vpop.f32.mrb[0].mxu0
      %v302 = vadd.f32 0.0, %v301
      %v303 = vpop.f32.mrb[0].mxu0
      %304 = vmatprep.mubr.bf16.mxu0 0
      %305 = vmatmul.mubr.bf16.gmra.mrb[0].mxu0 %v242
      %v306 = vpop.f32.mrb[0].mxu0
      %v307 = vadd.f32 0.0, %v306
      %v308 = vpop.f32.mrb[0].mxu0
      %v309 = vpop.f32.mrb[0].mxu0
      %v310 = vadd.f32 0.0, %v309
      %v311 = vpop.f32.mrb[0].mxu0
      %312 = vdwg.mxu0
      %v313 = vld [vmem:[%s2] sm:$0x1]
      %v315 = vlaneseq
      %v316 = vshrl.u32 %v315, 7
      %v317 = vsub.s32 0, %v316
      %v318 = vrot.slane %v313, %v317
      %v320 = vmul.f32 %v283, %v318
      %v321 = vmul.f32 %v286, %v318
      %v322 = vmul.f32 %v291, %v318
      %v323 = vmul.f32 %v294, %v318
      %v324 = vmul.f32 %v299, %v318
      %v325 = vmul.f32 %v302, %v318
      %v326 = vmul.f32 %v307, %v318
      %v327 = vmul.f32 %v310, %v318
      %v328 = vld [vmem:[%s3] sm:$0x1]
      %v330 = vlaneseq
      %v331 = vshrl.u32 %v330, 7
      %v332 = vsub.s32 0, %v331
      %v333 = vrot.slane %v328, %v332
      %v335 = vadd.f32 %v320, %v333
      %v336 = vadd.f32 %v321, %v333
      %v337 = vadd.f32 %v322, %v333
      %v338 = vadd.f32 %v323, %v333
      %v339 = vadd.f32 %v324, %v333
      %v340 = vadd.f32 %v325, %v333
      %v341 = vadd.f32 %v326, %v333
      %v342 = vadd.f32 %v327, %v333
      %v343 = vmax.f32 %v335, 0.0
      %v344 = vmax.f32 %v336, 0.0
      %v345 = vmax.f32 %v337, 0.0
      %v346 = vmax.f32 %v338, 0.0
      %v347 = vmax.f32 %v339, 0.0
      %v348 = vmax.f32 %v340, 0.0
      %v349 = vmax.f32 %v341, 0.0
      %v350 = vmax.f32 %v342, 0.0
      %v351 = vpack.c.bf16 %v344, %v343
      %v352 = vpack.c.bf16 %v346, %v345
      %v353 = vpack.c.bf16 %v348, %v347
      %v354 = vpack.c.bf16 %v350, %v349
      %v359 = vunpack.c.l.b16 %v351
      %v360 = vunpack.c.h.b16 %v351
      %v361 = vunpack.c.l.b16 %v352
      %v362 = vunpack.c.h.b16 %v352
      %v363 = vunpack.c.l.b16 %v353
      %v364 = vunpack.c.h.b16 %v353
      %v365 = vunpack.c.l.b16 %v354
      %v366 = vunpack.c.h.b16 %v354
      %v367 = vpack.c.b16 %v359, %v359
      %v368 = vpack.c.b16 %v360, %v360
      %v369 = vpack.c.b16 %v361, %v361
      %v370 = vpack.c.b16 %v362, %v362
      %v371 = vpack.c.b16 %v363, %v363
      %v372 = vpack.c.b16 %v364, %v364
      %v373 = vpack.c.b16 %v365, %v365
      %v374 = vpack.c.b16 %v366, %v366
      %vm383 = vcmask 60416
      %384 = vst.msk [vmem:[%s199] sm:$0xf] %vm383, %v367
      %385 = vst.msk [vmem:[%s199 + $0x4] sm:$0xf] %vm383, %v368
      %386 = vst.msk [vmem:[%s199 + $0x8] sm:$0xf] %vm383, %v369
      %387 = vst.msk [vmem:[%s199 + $0xc] sm:$0xf] %vm383, %v370
      %388 = vst.msk [vmem:[%s199 + $0x10] sm:$0xf] %vm383, %v371
      %389 = vst.msk [vmem:[%s199 + $0x14] sm:$0xf] %vm383, %v372
      %390 = vst.msk [vmem:[%s199 + $0x18] sm:$0xf] %vm383, %v373
      %391 = vst.msk [vmem:[%s199 + $0x1c] sm:$0xf] %vm383, %v374
      %s392 = smul.u32 8, %s15
      %p393 = scmp.lt.s32.totalorder %s392, 15
      %s394 = scalar_select %p393, %s392, 15
      %s395 = smul.addr %s394, 4
      %s396 = scalar_lea.vmem %s4, %s395
      // Predicated region
      $region37: #{resblock50_forward.4} parent=35 // pred_check
        %p397 = pneg %p122
      $region38: #{resblock50_forward.4} parent=35 // pred_check_branch
        %399 = sbr.rel (%p397) target = $region40
      $region39: #{resblock50_forward.4} parent=35 // pred_region
        %s400 = smul.u32 8, %s15
      $region40: #{resblock50_forward.4} parent=35 // pred_fallthru
        _
    $region36: #{resblock50_forward.4} parent=5 // pred_fallthru
      _
    %p401 = scmp.le.s32.totalorder 2, %s10
    // Predicated region
    $region41: #{resblock50_forward.4} parent=5 // pred_check
      %p402 = pneg %p401
    $region42: #{resblock50_forward.4} parent=5 // pred_check_branch
      %404 = sbr.rel (%p402) target = $region44
    $region43: #{resblock50_forward.4} parent=5 // pred_region
      %s405 = ssub.s32 %s10, 2
      // Predicated region
      $region45: #{resblock50_forward.4} parent=43 // pred_check
        %p406 = pneg %p128
      $region46: #{resblock50_forward.4} parent=43 // pred_check_branch
        %408 = sbr.rel (%p406) target = $region48
      $region47: #{resblock50_forward.4} parent=43 // pred_region
        %s409 = smul.u32 8, %s16
        %p410 = scmp.lt.s32.totalorder %s409, 15
        %s411 = scalar_select %p410, %s409, 15
        %s412 = smul.addr %s411, 4
        %s413 = scalar_lea.vmem %s4, %s412
      $region48: #{resblock50_forward.4} parent=43 // pred_fallthru
        _
    $region44: #{resblock50_forward.4} parent=5 // pred_fallthru
      _
  $region6: #{resblock50_forward.4} parent=0 // loop_footer
    %s14 = sadd.s32 1, %s10
  $region7: #{resblock50_forward.4} parent=0 // loop_footer_branch
    %9 = sbr.rel target = $region3
  $region8: #{resblock50_forward.4} parent=0 // loop_exit
    _

// kernel: resblock50_forward.6
$region0: #{resblock50_forward.6}
  #allocation0 [shape = 'u32[]', space=smem, size = 0x4, offset = 0x4, fixed_abs, tag = 'smem constant byte address 0x4 - core index']
  #allocation1 [shape = 'u32[144,128]{1,0:T(1,128)}', space=vmem, size = 0x12000, scoped, tag = 'internal scratch']
  %s0 = inlined_call_operand.vmem [shape: bf16[128,4], index: 0, kind: input, shape index: {}]
  %s1 = inlined_call_operand.vmem [shape: bf16[4,32], index: 1, kind: input, shape index: {}]
  %s2 = inlined_call_operand.vmem [shape: f32[1,32], index: 2, kind: input, shape index: {}]
  %s3 = inlined_call_operand.vmem [shape: f32[1,32], index: 3, kind: input, shape index: {}]
  %s4 = inlined_call_operand.vmem [shape: bf16[128,32], index: 4, kind: output, shape index: {}]
  %s5 = sld [smem:[#allocation0]]
  $region49: #{resblock50_forward.6} parent=0
    _
  %s7 = ssub.s32 1, %s5
  %s8 = scalar_select 0, %s7, %s5
  loop: start=0, step=1, limit=4
  $region2: #{resblock50_forward.6} parent=0 // loop_pre_header
    _
  $region3: #{resblock50_forward.6} parent=0 // loop_header
    %s10 = sphi 0, %s14
    %p11 = scmp.ge.s32.totalorder %s10, 4
    %s20 = sphi 0, %s22
    %s23 = sphi 0, %s20
    %s24 = sphi 0, %s23
    %s40 = sphi 0, %s24
    %s44 = sphi 0, %s44
    %s46 = sphi 0, %s44
    %s47 = sphi 0, %s46
    %s61 = sphi 0, %s47
    %s65 = sphi 0, %s65
    %s67 = sphi 0, %s65
    %s68 = sphi 0, %s67
    %s82 = sphi 0, %s68
    %s86 = sphi 0, %s86
    %s88 = sphi 0, %s86
    %s89 = sphi 0, %s88
    %s103 = sphi 0, %s89
    %s109 = sphi 0, %s111
    %s112 = sphi 0, %s109
    %s113 = sphi 0, %s112
    %s129 = sphi 0, %s113
  $region4: #{resblock50_forward.6} parent=0 // loop_header_branch
    %13 = sbr.rel (%p11) target = $region8
  $region5: #{resblock50_forward.6} parent=0 // loop_body
    %s15 = ssub.s32 %s10, 1
    %s16 = ssub.s32 %s10, 2
    %s17 = sadd.s32 %s10, 1
    %s18 = ssub.s32 %s10, %s17
    %p19 = scmp.eq.s32.totalorder %s18, 0
    %s21 = sadd.s32 %s20, 1
    %s22 = scalar_select %p19, %s20, %s21
    %p25 = pneg %p19
    %p26 = scmp.eq.s32.totalorder %s10, 1
    %p27 = por %p25, %p26
    %p28 = scmp.ne.s32.totalorder %s20, %s23
    %p29 = scmp.eq.s32.totalorder %s10, 0
    %p30 = por %p28, %p29
    %p31 = scmp.ne.s32.totalorder %s20, %s23
    %p32 = scmp.eq.s32.totalorder %s15, 1
    %p33 = por %p31, %p32
    %p34 = scmp.ne.s32.totalorder %s23, %s24
    %p35 = scmp.eq.s32.totalorder %s15, 0
    %p36 = por %p34, %p35
    %p37 = scmp.ne.s32.totalorder %s23, %s24
    %p38 = scmp.eq.s32.totalorder %s16, 1
    %p39 = por %p37, %p38
    %p41 = scmp.ne.s32.totalorder %s24, %s40
    %p42 = scmp.eq.s32.totalorder %s16, 0
    %p43 = por %p41, %p42
    %s45 = sadd.s32 %s44, 1
    %p48 = scmp.eq.s32.totalorder %s10, 1
    %p49 = scmp.ne.s32.totalorder %s44, %s46
    %p50 = scmp.eq.s32.totalorder %s10, 0
    %p51 = por %p49, %p50
    %p52 = scmp.ne.s32.totalorder %s44, %s46
    %p53 = scmp.eq.s32.totalorder %s15, 1
    %p54 = por %p52, %p53
    %p55 = scmp.ne.s32.totalorder %s46, %s47
    %p56 = scmp.eq.s32.totalorder %s15, 0
    %p57 = por %p55, %p56
    %p58 = scmp.ne.s32.totalorder %s46, %s47
    %p59 = scmp.eq.s32.totalorder %s16, 1
    %p60 = por %p58, %p59
    %p62 = scmp.ne.s32.totalorder %s47, %s61
    %p63 = scmp.eq.s32.totalorder %s16, 0
    %p64 = por %p62, %p63
    %s66 = sadd.s32 %s65, 1
    %p69 = scmp.eq.s32.totalorder %s10, 1
    %p70 = scmp.ne.s32.totalorder %s65, %s67
    %p71 = scmp.eq.s32.totalorder %s10, 0
    %p72 = por %p70, %p71
    %p73 = scmp.ne.s32.totalorder %s65, %s67
    %p74 = scmp.eq.s32.totalorder %s15, 1
    %p75 = por %p73, %p74
    %p76 = scmp.ne.s32.totalorder %s67, %s68
    %p77 = scmp.eq.s32.totalorder %s15, 0
    %p78 = por %p76, %p77
    %p79 = scmp.ne.s32.totalorder %s67, %s68
    %p80 = scmp.eq.s32.totalorder %s16, 1
    %p81 = por %p79, %p80
    %p83 = scmp.ne.s32.totalorder %s68, %s82
    %p84 = scmp.eq.s32.totalorder %s16, 0
    %p85 = por %p83, %p84
    %s87 = sadd.s32 %s86, 1
    %p90 = scmp.eq.s32.totalorder %s10, 1
    %p91 = scmp.ne.s32.totalorder %s86, %s88
    %p92 = scmp.eq.s32.totalorder %s10, 0
    %p93 = por %p91, %p92
    %p94 = scmp.ne.s32.totalorder %s86, %s88
    %p95 = scmp.eq.s32.totalorder %s15, 1
    %p96 = por %p94, %p95
    %p97 = scmp.ne.s32.totalorder %s88, %s89
    %p98 = scmp.eq.s32.totalorder %s15, 0
    %p99 = por %p97, %p98
    %p100 = scmp.ne.s32.totalorder %s88, %s89
    %p101 = scmp.eq.s32.totalorder %s16, 1
    %p102 = por %p100, %p101
    %p104 = scmp.ne.s32.totalorder %s89, %s103
    %p105 = scmp.eq.s32.totalorder %s16, 0
    %p106 = por %p104, %p105
    %s107 = ssub.s32 %s10, %s17
    %p108 = scmp.eq.s32.totalorder %s107, 0
    %s110 = sadd.s32 %s109, 1
    %s111 = scalar_select %p108, %s109, %s110
    %p114 = pneg %p108
    %p115 = scmp.eq.s32.totalorder %s10, 1
    %p116 = por %p114, %p115
    %p117 = scmp.ne.s32.totalorder %s109, %s112
    %p118 = scmp.eq.s32.totalorder %s10, 0
    %p119 = por %p117, %p118
    %p120 = scmp.ne.s32.totalorder %s109, %s112
    %p121 = scmp.eq.s32.totalorder %s15, 1
    %p122 = por %p120, %p121
    %p123 = scmp.ne.s32.totalorder %s112, %s113
    %p124 = scmp.eq.s32.totalorder %s15, 0
    %p125 = por %p123, %p124
    %p126 = scmp.ne.s32.totalorder %s112, %s113
    %p127 = scmp.eq.s32.totalorder %s16, 1
    %p128 = por %p126, %p127
    %p130 = scmp.ne.s32.totalorder %s113, %s129
    %p131 = scmp.eq.s32.totalorder %s16, 0
    %p132 = por %p130, %p131
    %p133 = scmp.le.s32.totalorder 1, %s10
    %p134 = scmp.lt.s32.totalorder %s10, 3
    %p135 = pnand %p133, %p134
    %p136 = pneg %p135
    // Predicated region
    $region9: #{resblock50_forward.6} parent=5 // pred_check
      _
    $region10: #{resblock50_forward.6} parent=5 // pred_check_branch
      %138 = sbr.rel (%p135) target = $region12
    $region11: #{resblock50_forward.6} parent=5 // pred_region
      %s139 = ssub.s32 %s10, 1
      // Predicated region
      $region13: #{resblock50_forward.6} parent=11 // pred_check
        %p140 = pneg %p57
      $region14: #{resblock50_forward.6} parent=11 // pred_check_branch
        %142 = sbr.rel (%p140) target = $region16
      $region15: #{resblock50_forward.6} parent=11 // pred_region
        _
      $region16: #{resblock50_forward.6} parent=11 // pred_fallthru
        _
      // Predicated region
      $region17: #{resblock50_forward.6} parent=11 // pred_check
        %p143 = pneg %p78
      $region18: #{resblock50_forward.6} parent=11 // pred_check_branch
        %145 = sbr.rel (%p143) target = $region20
      $region19: #{resblock50_forward.6} parent=11 // pred_region
        _
      $region20: #{resblock50_forward.6} parent=11 // pred_fallthru
        _
      // Predicated region
      $region21: #{resblock50_forward.6} parent=11 // pred_check
        %p146 = pneg %p99
      $region22: #{resblock50_forward.6} parent=11 // pred_check_branch
        %148 = sbr.rel (%p146) target = $region24
      $region23: #{resblock50_forward.6} parent=11 // pred_region
        _
      $region24: #{resblock50_forward.6} parent=11 // pred_fallthru
        _
    $region12: #{resblock50_forward.6} parent=5 // pred_fallthru
      _
    %p149 = scmp.lt.s32.totalorder %s10, 2
    // Predicated region
    $region25: #{resblock50_forward.6} parent=5 // pred_check
      %p150 = pneg %p149
    $region26: #{resblock50_forward.6} parent=5 // pred_check_branch
      %152 = sbr.rel (%p150) target = $region28
    $region27: #{resblock50_forward.6} parent=5 // pred_region
      // Predicated region
      $region29: #{resblock50_forward.6} parent=27 // pred_check
        %p153 = pneg %p30
      $region30: #{resblock50_forward.6} parent=27 // pred_check_branch
        %155 = sbr.rel (%p153) target = $region32
      $region31: #{resblock50_forward.6} parent=27 // pred_region
        %s156 = smul.u32 8, %s10
        %p157 = scmp.lt.s32.totalorder %s156, 15
        %s158 = scalar_select %p157, %s156, 15
        %s159 = smul.addr %s158, 4
        %s160 = scalar_lea.vmem %s0, %s159
        %s161 = smul.u32 8, %s10
      $region32: #{resblock50_forward.6} parent=27 // pred_fallthru
        _
    $region28: #{resblock50_forward.6} parent=5 // pred_fallthru
      _
    %p162 = scmp.le.s32.totalorder 1, %s10
    %p163 = scmp.lt.s32.totalorder %s10, 3
    %p164 = pnand %p162, %p163
    %p165 = pneg %p164
    // Predicated region
    $region33: #{resblock50_forward.6} parent=5 // pred_check
      _
    $region34: #{resblock50_forward.6} parent=5 // pred_check_branch
      %167 = sbr.rel (%p164) target = $region36
    $region35: #{resblock50_forward.6} parent=5 // pred_region
      %s168 = ssub.s32 %s10, 1
      %s169 = smul.u32 8, %s15
      %p170 = scmp.lt.s32.totalorder %s169, 15
      %s171 = scalar_select %p170, %s169, 15
      %s172 = smul.addr %s171, 4
      %s173 = scalar_lea.vmem %s0, %s172
      %p174 = pneg %p36
      %p175 = pneg %p33
      %p176 = pneg %p57
      %p177 = pneg %p54
      %p178 = pneg %p78
      %p179 = pneg %p75
      %p180 = pneg %p99
      %p181 = pneg %p96
      %p182 = pneg %p125
      %p183 = pneg %p122
      %s184 = smul.u32 8, %s15
      %p185 = scmp.lt.s32.totalorder %s184, 15
      %s186 = scalar_select %p185, %s184, 15
      %s187 = smul.addr %s186, 4
      %s188 = scalar_lea.vmem %s4, %s187
      %s189 = smul.u32 8, %s15
      %p190 = scmp.lt.s32.totalorder %s189, 15
      %s191 = scalar_select %p190, %s189, 15
      %s192 = smul.addr %s191, 4
      %s193 = scalar_lea.vmem %s0, %s192
      %s194 = smul.u32 8, %s15
      %s195 = smul.u32 8, %s15
      %p196 = scmp.lt.s32.totalorder %s195, 15
      %s197 = scalar_select %p196, %s195, 15
      %s198 = smul.addr %s197, 4
      %s199 = scalar_lea.vmem %s4, %s198
      %s200 = smul.u32 8, %s15
      %v202 = vld [vmem:[%s193] sm:$0xf]
      %v203 = vld [vmem:[%s193 + $0x4] sm:$0xf]
      %v204 = vld [vmem:[%s193 + $0x8] sm:$0xf]
      %v205 = vld [vmem:[%s193 + $0xc] sm:$0xf]
      %v206 = vld [vmem:[%s193 + $0x10] sm:$0xf]
      %v207 = vld [vmem:[%s193 + $0x14] sm:$0xf]
      %v208 = vld [vmem:[%s193 + $0x18] sm:$0xf]
      %v209 = vld [vmem:[%s193 + $0x1c] sm:$0xf]
      %v210 = vld [vmem:[%s1] sm:$0x3]
      %v219 = vunpack.c.l.b16 %v202
      %v220 = vunpack.c.l.b16 %v203
      %v221 = vunpack.c.l.b16 %v204
      %v222 = vunpack.c.l.b16 %v205
      %v223 = vunpack.c.l.b16 %v206
      %v224 = vunpack.c.l.b16 %v207
      %v225 = vunpack.c.l.b16 %v208
      %v226 = vunpack.c.l.b16 %v209
      %v227 = vpack.c.b16 %v220, %v219
      %v228 = vpack.c.b16 %v222, %v221
      %v229 = vpack.c.b16 %v224, %v223
      %v230 = vpack.c.b16 %v226, %v225
      %vm231 = vcmask 31744
      %v233 = vsel %vm231, %v227, 0
      %v236 = vsel %vm231, %v228, 0
      %v239 = vsel %vm231, %v229, 0
      %v242 = vsel %vm231, %v230, 0
      %vm244 = vcmask 1041408
      %v246 = vsel %vm244, %v210, 0
      %248 = vmatprep.subr.bf16.mxu0 0
      %249 = vmatpush1.bf16.msra.mxu0 %v246
      %250 = vmatprep.subr.bf16.mxu0 0
      %251 = vmatpush1.bf16.msra.mxu0 0
      %252 = vmatprep.subr.bf16.mxu0 0
      %253 = vmatpush1.bf16.msra.mxu0 0
      %254 = vmatprep.subr.bf16.mxu0 0
      %255 = vmatpush1.bf16.msra.mxu0 0
      %256 = vmatprep.subr.bf16.mxu0 0
      %257 = vmatpush1.bf16.msra.mxu0 0
      %258 = vmatprep.subr.bf16.mxu0 0
      %259 = vmatpush1.bf16.msra.mxu0 0
      %260 = vmatprep.subr.bf16.mxu0 0
      %261 = vmatpush1.bf16.msra.mxu0 0
      %262 = vmatprep.subr.bf16.mxu0 0
      %263 = vmatpush1.bf16.msra.mxu0 0
      %264 = vmatprep.subr.bf16.mxu0 0
      %265 = vmatpush1.bf16.msra.mxu0 0
      %266 = vmatprep.subr.bf16.mxu0 0
      %267 = vmatpush1.bf16.msra.mxu0 0
      %268 = vmatprep.subr.bf16.mxu0 0
      %269 = vmatpush1.bf16.msra.mxu0 0
      %270 = vmatprep.subr.bf16.mxu0 0
      %271 = vmatpush1.bf16.msra.mxu0 0
      %272 = vmatprep.subr.bf16.mxu0 0
      %273 = vmatpush1.bf16.msra.mxu0 0
      %274 = vmatprep.subr.bf16.mxu0 0
      %275 = vmatpush1.bf16.msra.mxu0 0
      %276 = vmatprep.subr.bf16.mxu0 0
      %277 = vmatpush1.bf16.msra.mxu0 0
      %278 = vmatprep.subr.bf16.mxu0 0
      %279 = vmatpush1.bf16.msra.mxu0 0
      %280 = vmatprep.mubr.bf16.mxu0 0
      %281 = vmatmul.mubr.bf16.gmra.mrb[0].mxu0 %v233
      %v282 = vpop.f32.mrb[0].mxu0
      %v283 = vadd.f32 0.0, %v282
      %v284 = vpop.f32.mrb[0].mxu0
      %v285 = vpop.f32.mrb[0].mxu0
      %v286 = vadd.f32 0.0, %v285
      %v287 = vpop.f32.mrb[0].mxu0
      %288 = vmatprep.mubr.bf16.mxu0 0
      %289 = vmatmul.mubr.bf16.gmra.mrb[0].mxu0 %v236
      %v290 = vpop.f32.mrb[0].mxu0
      %v291 = vadd.f32 0.0, %v290
      %v292 = vpop.f32.mrb[0].mxu0
      %v293 = vpop.f32.mrb[0].mxu0
      %v294 = vadd.f32 0.0, %v293
      %v295 = vpop.f32.mrb[0].mxu0
      %296 = vmatprep.mubr.bf16.mxu0 0
      %297 = vmatmul.mubr.bf16.gmra.mrb[0].mxu0 %v239
      %v298 = vpop.f32.mrb[0].mxu0
      %v299 = vadd.f32 0.0, %v298
      %v300 = vpop.f32.mrb[0].mxu0
      %v301 = vpop.f32.mrb[0].mxu0
      %v302 = vadd.f32 0.0, %v301
      %v303 = vpop.f32.mrb[0].mxu0
      %304 = vmatprep.mubr.bf16.mxu0 0
      %305 = vmatmul.mubr.bf16.gmra.mrb[0].mxu0 %v242
      %v306 = vpop.f32.mrb[0].mxu0
      %v307 = vadd.f32 0.0, %v306
      %v308 = vpop.f32.mrb[0].mxu0
      %v309 = vpop.f32.mrb[0].mxu0
      %v310 = vadd.f32 0.0, %v309
      %v311 = vpop.f32.mrb[0].mxu0
      %312 = vdwg.mxu0
      %v313 = vld [vmem:[%s2] sm:$0x1]
      %v315 = vlaneseq
      %v316 = vshrl.u32 %v315, 7
      %v317 = vsub.s32 0, %v316
      %v318 = vrot.slane %v313, %v317
      %v320 = vmul.f32 %v283, %v318
      %v321 = vmul.f32 %v286, %v318
      %v322 = vmul.f32 %v291, %v318
      %v323 = vmul.f32 %v294, %v318
      %v324 = vmul.f32 %v299, %v318
      %v325 = vmul.f32 %v302, %v318
      %v326 = vmul.f32 %v307, %v318
      %v327 = vmul.f32 %v310, %v318
      %v328 = vld [vmem:[%s3] sm:$0x1]
      %v330 = vlaneseq
      %v331 = vshrl.u32 %v330, 7
      %v332 = vsub.s32 0, %v331
      %v333 = vrot.slane %v328, %v332
      %v335 = vadd.f32 %v320, %v333
      %v336 = vadd.f32 %v321, %v333
      %v337 = vadd.f32 %v322, %v333
      %v338 = vadd.f32 %v323, %v333
      %v339 = vadd.f32 %v324, %v333
      %v340 = vadd.f32 %v325, %v333
      %v341 = vadd.f32 %v326, %v333
      %v342 = vadd.f32 %v327, %v333
      %v343 = vpack.c.bf16 %v336, %v335
      %v344 = vpack.c.bf16 %v338, %v337
      %v345 = vpack.c.bf16 %v340, %v339
      %v346 = vpack.c.bf16 %v342, %v341
      %v351 = vunpack.c.l.b16 %v343
      %v352 = vunpack.c.h.b16 %v343
      %v353 = vunpack.c.l.b16 %v344
      %v354 = vunpack.c.h.b16 %v344
      %v355 = vunpack.c.l.b16 %v345
      %v356 = vunpack.c.h.b16 %v345
      %v357 = vunpack.c.l.b16 %v346
      %v358 = vunpack.c.h.b16 %v346
      %v359 = vpack.c.b16 %v351, %v351
      %v360 = vpack.c.b16 %v352, %v352
      %v361 = vpack.c.b16 %v353, %v353
      %v362 = vpack.c.b16 %v354, %v354
      %v363 = vpack.c.b16 %v355, %v355
      %v364 = vpack.c.b16 %v356, %v356
      %v365 = vpack.c.b16 %v357, %v357
      %v366 = vpack.c.b16 %v358, %v358
      %vm375 = vcmask 257024
      %376 = vst.msk [vmem:[%s199] sm:$0xf] %vm375, %v359
      %377 = vst.msk [vmem:[%s199 + $0x4] sm:$0xf] %vm375, %v360
      %378 = vst.msk [vmem:[%s199 + $0x8] sm:$0xf] %vm375, %v361
      %379 = vst.msk [vmem:[%s199 + $0xc] sm:$0xf] %vm375, %v362
      %380 = vst.msk [vmem:[%s199 + $0x10] sm:$0xf] %vm375, %v363
      %381 = vst.msk [vmem:[%s199 + $0x14] sm:$0xf] %vm375, %v364
      %382 = vst.msk [vmem:[%s199 + $0x18] sm:$0xf] %vm375, %v365
      %383 = vst.msk [vmem:[%s199 + $0x1c] sm:$0xf] %vm375, %v366
      %s384 = smul.u32 8, %s15
      %p385 = scmp.lt.s32.totalorder %s384, 15
      %s386 = scalar_select %p385, %s384, 15
      %s387 = smul.addr %s386, 4
      %s388 = scalar_lea.vmem %s4, %s387
      // Predicated region
      $region37: #{resblock50_forward.6} parent=35 // pred_check
        %p389 = pneg %p122
      $region38: #{resblock50_forward.6} parent=35 // pred_check_branch
        %391 = sbr.rel (%p389) target = $region40
      $region39: #{resblock50_forward.6} parent=35 // pred_region
        %s392 = smul.u32 8, %s15
      $region40: #{resblock50_forward.6} parent=35 // pred_fallthru
        _
    $region36: #{resblock50_forward.6} parent=5 // pred_fallthru
      _
    %p393 = scmp.le.s32.totalorder 2, %s10
    // Predicated region
    $region41: #{resblock50_forward.6} parent=5 // pred_check
      %p394 = pneg %p393
    $region42: #{resblock50_forward.6} parent=5 // pred_check_branch
      %396 = sbr.rel (%p394) target = $region44
    $region43: #{resblock50_forward.6} parent=5 // pred_region
      %s397 = ssub.s32 %s10, 2
      // Predicated region
      $region45: #{resblock50_forward.6} parent=43 // pred_check
        %p398 = pneg %p128
      $region46: #{resblock50_forward.6} parent=43 // pred_check_branch
        %400 = sbr.rel (%p398) target = $region48
      $region47: #{resblock50_forward.6} parent=43 // pred_region
        %s401 = smul.u32 8, %s16
        %p402 = scmp.lt.s32.totalorder %s401, 15
        %s403 = scalar_select %p402, %s401, 15
        %s404 = smul.addr %s403, 4
        %s405 = scalar_lea.vmem %s4, %s404
      $region48: #{resblock50_forward.6} parent=43 // pred_fallthru
        _
    $region44: #{resblock50_forward.6} parent=5 // pred_fallthru
      _
  $region6: #{resblock50_forward.6} parent=0 // loop_footer
    %s14 = sadd.s32 1, %s10
  $region7: #{resblock50_forward.6} parent=0 // loop_footer_branch
    %9 = sbr.rel target = $region3
  $region8: #{resblock50_forward.6} parent=0 // loop_exit
    _

// kernel: resblock50_forward.5
$region0: #{resblock50_forward.5}
  #allocation0 [shape = 'u32[]', space=smem, size = 0x4, offset = 0x4, fixed_abs, tag = 'smem constant byte address 0x4 - core index']
  #allocation1 [shape = 'u32[144,128]{1,0:T(1,128)}', space=vmem, size = 0x12000, scoped, tag = 'internal scratch']
  %s0 = inlined_call_operand.vmem [shape: bf16[2,8,8,8], index: 0, kind: input, shape index: {}]
  %s1 = inlined_call_operand.vmem [shape: bf16[9,8,8], index: 1, kind: input, shape index: {}]
  %s2 = inlined_call_operand.vmem [shape: f32[1,8], index: 2, kind: input, shape index: {}]
  %s3 = inlined_call_operand.vmem [shape: f32[1,8], index: 3, kind: input, shape index: {}]
  %s4 = inlined_call_operand.vmem [shape: bf16[2,8,8,8], index: 4, kind: output, shape index: {}]
  %s5 = sld [smem:[#allocation0]]
  $region49: #{resblock50_forward.5} parent=0
    _
  %s7 = ssub.s32 1, %s5
  %s8 = scalar_select 0, %s7, %s5
  loop: start=0, step=1, limit=4
  $region2: #{resblock50_forward.5} parent=0 // loop_pre_header
    _
  $region3: #{resblock50_forward.5} parent=0 // loop_header
    %s10 = sphi 0, %s14
    %p11 = scmp.ge.s32.totalorder %s10, 4
    %s20 = sphi 0, %s22
    %s23 = sphi 0, %s20
    %s24 = sphi 0, %s23
    %s40 = sphi 0, %s24
    %s44 = sphi 0, %s44
    %s46 = sphi 0, %s44
    %s47 = sphi 0, %s46
    %s61 = sphi 0, %s47
    %s65 = sphi 0, %s65
    %s67 = sphi 0, %s65
    %s68 = sphi 0, %s67
    %s82 = sphi 0, %s68
    %s86 = sphi 0, %s86
    %s88 = sphi 0, %s86
    %s89 = sphi 0, %s88
    %s103 = sphi 0, %s89
    %s109 = sphi 0, %s111
    %s112 = sphi 0, %s109
    %s113 = sphi 0, %s112
    %s129 = sphi 0, %s113
  $region4: #{resblock50_forward.5} parent=0 // loop_header_branch
    %13 = sbr.rel (%p11) target = $region8
  $region5: #{resblock50_forward.5} parent=0 // loop_body
    %s15 = ssub.s32 %s10, 1
    %s16 = ssub.s32 %s10, 2
    %s17 = sadd.s32 %s10, 1
    %s18 = ssub.s32 %s10, %s17
    %p19 = scmp.eq.s32.totalorder %s18, 0
    %s21 = sadd.s32 %s20, 1
    %s22 = scalar_select %p19, %s20, %s21
    %p25 = pneg %p19
    %p26 = scmp.eq.s32.totalorder %s10, 1
    %p27 = por %p25, %p26
    %p28 = scmp.ne.s32.totalorder %s20, %s23
    %p29 = scmp.eq.s32.totalorder %s10, 0
    %p30 = por %p28, %p29
    %p31 = scmp.ne.s32.totalorder %s20, %s23
    %p32 = scmp.eq.s32.totalorder %s15, 1
    %p33 = por %p31, %p32
    %p34 = scmp.ne.s32.totalorder %s23, %s24
    %p35 = scmp.eq.s32.totalorder %s15, 0
    %p36 = por %p34, %p35
    %p37 = scmp.ne.s32.totalorder %s23, %s24
    %p38 = scmp.eq.s32.totalorder %s16, 1
    %p39 = por %p37, %p38
    %p41 = scmp.ne.s32.totalorder %s24, %s40
    %p42 = scmp.eq.s32.totalorder %s16, 0
    %p43 = por %p41, %p42
    %s45 = sadd.s32 %s44, 1
    %p48 = scmp.eq.s32.totalorder %s10, 1
    %p49 = scmp.ne.s32.totalorder %s44, %s46
    %p50 = scmp.eq.s32.totalorder %s10, 0
    %p51 = por %p49, %p50
    %p52 = scmp.ne.s32.totalorder %s44, %s46
    %p53 = scmp.eq.s32.totalorder %s15, 1
    %p54 = por %p52, %p53
    %p55 = scmp.ne.s32.totalorder %s46, %s47
    %p56 = scmp.eq.s32.totalorder %s15, 0
    %p57 = por %p55, %p56
    %p58 = scmp.ne.s32.totalorder %s46, %s47
    %p59 = scmp.eq.s32.totalorder %s16, 1
    %p60 = por %p58, %p59
    %p62 = scmp.ne.s32.totalorder %s47, %s61
    %p63 = scmp.eq.s32.totalorder %s16, 0
    %p64 = por %p62, %p63
    %s66 = sadd.s32 %s65, 1
    %p69 = scmp.eq.s32.totalorder %s10, 1
    %p70 = scmp.ne.s32.totalorder %s65, %s67
    %p71 = scmp.eq.s32.totalorder %s10, 0
    %p72 = por %p70, %p71
    %p73 = scmp.ne.s32.totalorder %s65, %s67
    %p74 = scmp.eq.s32.totalorder %s15, 1
    %p75 = por %p73, %p74
    %p76 = scmp.ne.s32.totalorder %s67, %s68
    %p77 = scmp.eq.s32.totalorder %s15, 0
    %p78 = por %p76, %p77
    %p79 = scmp.ne.s32.totalorder %s67, %s68
    %p80 = scmp.eq.s32.totalorder %s16, 1
    %p81 = por %p79, %p80
    %p83 = scmp.ne.s32.totalorder %s68, %s82
    %p84 = scmp.eq.s32.totalorder %s16, 0
    %p85 = por %p83, %p84
    %s87 = sadd.s32 %s86, 1
    %p90 = scmp.eq.s32.totalorder %s10, 1
    %p91 = scmp.ne.s32.totalorder %s86, %s88
    %p92 = scmp.eq.s32.totalorder %s10, 0
    %p93 = por %p91, %p92
    %p94 = scmp.ne.s32.totalorder %s86, %s88
    %p95 = scmp.eq.s32.totalorder %s15, 1
    %p96 = por %p94, %p95
    %p97 = scmp.ne.s32.totalorder %s88, %s89
    %p98 = scmp.eq.s32.totalorder %s15, 0
    %p99 = por %p97, %p98
    %p100 = scmp.ne.s32.totalorder %s88, %s89
    %p101 = scmp.eq.s32.totalorder %s16, 1
    %p102 = por %p100, %p101
    %p104 = scmp.ne.s32.totalorder %s89, %s103
    %p105 = scmp.eq.s32.totalorder %s16, 0
    %p106 = por %p104, %p105
    %s107 = ssub.s32 %s10, %s17
    %p108 = scmp.eq.s32.totalorder %s107, 0
    %s110 = sadd.s32 %s109, 1
    %s111 = scalar_select %p108, %s109, %s110
    %p114 = pneg %p108
    %p115 = scmp.eq.s32.totalorder %s10, 1
    %p116 = por %p114, %p115
    %p117 = scmp.ne.s32.totalorder %s109, %s112
    %p118 = scmp.eq.s32.totalorder %s10, 0
    %p119 = por %p117, %p118
    %p120 = scmp.ne.s32.totalorder %s109, %s112
    %p121 = scmp.eq.s32.totalorder %s15, 1
    %p122 = por %p120, %p121
    %p123 = scmp.ne.s32.totalorder %s112, %s113
    %p124 = scmp.eq.s32.totalorder %s15, 0
    %p125 = por %p123, %p124
    %p126 = scmp.ne.s32.totalorder %s112, %s113
    %p127 = scmp.eq.s32.totalorder %s16, 1
    %p128 = por %p126, %p127
    %p130 = scmp.ne.s32.totalorder %s113, %s129
    %p131 = scmp.eq.s32.totalorder %s16, 0
    %p132 = por %p130, %p131
    %p133 = scmp.le.s32.totalorder 1, %s10
    %p134 = scmp.lt.s32.totalorder %s10, 3
    %p135 = pnand %p133, %p134
    %p136 = pneg %p135
    // Predicated region
    $region9: #{resblock50_forward.5} parent=5 // pred_check
      _
    $region10: #{resblock50_forward.5} parent=5 // pred_check_branch
      %138 = sbr.rel (%p135) target = $region12
    $region11: #{resblock50_forward.5} parent=5 // pred_region
      %s139 = ssub.s32 %s10, 1
      // Predicated region
      $region13: #{resblock50_forward.5} parent=11 // pred_check
        %p140 = pneg %p57
      $region14: #{resblock50_forward.5} parent=11 // pred_check_branch
        %142 = sbr.rel (%p140) target = $region16
      $region15: #{resblock50_forward.5} parent=11 // pred_region
        _
      $region16: #{resblock50_forward.5} parent=11 // pred_fallthru
        _
      // Predicated region
      $region17: #{resblock50_forward.5} parent=11 // pred_check
        %p143 = pneg %p78
      $region18: #{resblock50_forward.5} parent=11 // pred_check_branch
        %145 = sbr.rel (%p143) target = $region20
      $region19: #{resblock50_forward.5} parent=11 // pred_region
        _
      $region20: #{resblock50_forward.5} parent=11 // pred_fallthru
        _
      // Predicated region
      $region21: #{resblock50_forward.5} parent=11 // pred_check
        %p146 = pneg %p99
      $region22: #{resblock50_forward.5} parent=11 // pred_check_branch
        %148 = sbr.rel (%p146) target = $region24
      $region23: #{resblock50_forward.5} parent=11 // pred_region
        _
      $region24: #{resblock50_forward.5} parent=11 // pred_fallthru
        _
    $region12: #{resblock50_forward.5} parent=5 // pred_fallthru
      _
    %p149 = scmp.lt.s32.totalorder %s10, 2
    // Predicated region
    $region25: #{resblock50_forward.5} parent=5 // pred_check
      %p150 = pneg %p149
    $region26: #{resblock50_forward.5} parent=5 // pred_check_branch
      %152 = sbr.rel (%p150) target = $region28
    $region27: #{resblock50_forward.5} parent=5 // pred_region
      // Predicated region
      $region29: #{resblock50_forward.5} parent=27 // pred_check
        %p153 = pneg %p30
      $region30: #{resblock50_forward.5} parent=27 // pred_check_branch
        %155 = sbr.rel (%p153) target = $region32
      $region31: #{resblock50_forward.5} parent=27 // pred_region
        %p156 = scmp.lt.s32.totalorder %s10, 1
        %s157 = scalar_select %p156, %s10, 1
        %s158 = smul.addr %s157, 8
        %s159 = smul.addr %s158, 4
        %s160 = scalar_lea.vmem %s0, %s159
      $region32: #{resblock50_forward.5} parent=27 // pred_fallthru
        _
    $region28: #{resblock50_forward.5} parent=5 // pred_fallthru
      _
    %p161 = scmp.le.s32.totalorder 1, %s10
    %p162 = scmp.lt.s32.totalorder %s10, 3
    %p163 = pnand %p161, %p162
    %p164 = pneg %p163
    // Predicated region
    $region33: #{resblock50_forward.5} parent=5 // pred_check
      _
    $region34: #{resblock50_forward.5} parent=5 // pred_check_branch
      %166 = sbr.rel (%p163) target = $region36
    $region35: #{resblock50_forward.5} parent=5 // pred_region
      %s167 = ssub.s32 %s10, 1
      %p168 = scmp.lt.s32.totalorder %s15, 1
      %s169 = scalar_select %p168, %s15, 1
      %s170 = smul.addr %s169, 8
      %s171 = smul.addr %s170, 4
      %s172 = scalar_lea.vmem %s0, %s171
      %p173 = pneg %p36
      %p174 = pneg %p33
      %p175 = pneg %p57
      %p176 = pneg %p54
      %p177 = pneg %p78
      %p178 = pneg %p75
      %p179 = pneg %p99
      %p180 = pneg %p96
      %p181 = pneg %p125
      %p182 = pneg %p122
      %p183 = scmp.lt.s32.totalorder %s15, 1
      %s184 = scalar_select %p183, %s15, 1
      %s185 = smul.addr %s184, 8
      %s186 = smul.addr %s185, 4
      %s187 = scalar_lea.vmem %s4, %s186
      %p188 = scmp.lt.s32.totalorder %s15, 1
      %s189 = scalar_select %p188, %s15, 1
      %s190 = smul.addr %s189, 8
      %s191 = smul.addr %s190, 4
      %s192 = scalar_lea.vmem %s0, %s191
      %p193 = scmp.lt.s32.totalorder %s15, 1
      %s194 = scalar_select %p193, %s15, 1
      %s195 = smul.addr %s194, 8
      %s196 = smul.addr %s195, 4
      %s197 = scalar_lea.vmem %s4, %s196
      %v199 = vld [vmem:[%s192] sm:$0xf]
      %v200 = vld [vmem:[%s192 + $0x4] sm:$0xf]
      %v201 = vld [vmem:[%s192 + $0x8] sm:$0xf]
      %v202 = vld [vmem:[%s192 + $0xc] sm:$0xf]
      %v203 = vld [vmem:[%s192 + $0x10] sm:$0xf]
      %v204 = vld [vmem:[%s192 + $0x14] sm:$0xf]
      %v205 = vld [vmem:[%s192 + $0x18] sm:$0xf]
      %v206 = vld [vmem:[%s192 + $0x1c] sm:$0xf]
      %v208 = vshrl.u32 0, 16
      %v210 = vrot.slane %v208, 7
      %v211 = vshll.u32 0, 16
      %v213 = vor.u32 %v210, %v211
      %v215 = vshrl.u32 %v199, 16
      %v217 = vrot.slane %v215, 7
      %v218 = vshll.u32 %v199, 16
      %v220 = vor.u32 %v217, %v218
      %v222 = vshrl.u32 %v200, 16
      %v224 = vrot.slane %v222, 7
      %v225 = vshll.u32 %v200, 16
      %v227 = vor.u32 %v224, %v225
      %v229 = vshrl.u32 %v201, 16
      %v231 = vrot.slane %v229, 7
      %v232 = vshll.u32 %v201, 16
      %v234 = vor.u32 %v231, %v232
      %v236 = vshrl.u32 %v202, 16
      %v238 = vrot.slane %v236, 7
      %v239 = vshll.u32 %v202, 16
      %v241 = vor.u32 %v238, %v239
      %v243 = vshrl.u32 %v203, 16
      %v245 = vrot.slane %v243, 7
      %v246 = vshll.u32 %v203, 16
      %v248 = vor.u32 %v245, %v246
      %v250 = vshrl.u32 %v204, 16
      %v252 = vrot.slane %v250, 7
      %v253 = vshll.u32 %v204, 16
      %v255 = vor.u32 %v252, %v253
      %v257 = vshrl.u32 %v205, 16
      %v259 = vrot.slane %v257, 7
      %v260 = vshll.u32 %v205, 16
      %v262 = vor.u32 %v259, %v260
      %v264 = vshrl.u32 %v206, 16
      %v266 = vrot.slane %v264, 7
      %v267 = vshll.u32 %v206, 16
      %v269 = vor.u32 %v266, %v267
      %vm279 = vcmask 1040384
      %vm280 = vsmask.f32 256
      %vm281 = vmand %vm279, %vm280
      %v282 = vsel %vm281, 0, %v213
      %v283 = vsel %vm281, 0, %v220
      %v284 = vsel %vm281, 0, %v227
      %v285 = vsel %vm281, 0, %v234
      %v286 = vsel %vm281, 0, %v241
      %v287 = vsel %vm281, 0, %v248
      %v288 = vsel %vm281, 0, %v255
      %v289 = vsel %vm281, 0, %v262
      %v290 = vsel %vm281, 0, %v269
      %vm291 = vcmask 1044480
      %vm292 = vsmask.f32 4352
      %vm293 = vmand %vm291, %vm292
      %v294 = vsel %vm293, %v282, 0
      %v295 = vsel %vm293, %v283, 0
      %v296 = vsel %vm293, %v284, 0
      %v297 = vsel %vm293, %v285, 0
      %v298 = vsel %vm293, %v286, 0
      %v299 = vsel %vm293, %v287, 0
      %v300 = vsel %vm293, %v288, 0
      %v301 = vsel %vm293, %v289, 0
      %v302 = vsel %vm293, %v290, 0
      %v303 = vld [vmem:[%s1] sm:$0xf]
      %v312 = vunpack.c.l.b16 %v294
      %v313 = vunpack.c.h.b16 %v294
      %v314 = vunpack.c.l.b16 %v295
      %v315 = vunpack.c.h.b16 %v295
      %v316 = vunpack.c.l.b16 %v296
      %v317 = vunpack.c.h.b16 %v296
      %v318 = vunpack.c.l.b16 %v297
      %v319 = vunpack.c.h.b16 %v297
      %v320 = vunpack.c.l.b16 %v298
      %v321 = vunpack.c.h.b16 %v298
      %v322 = vunpack.c.l.b16 %v299
      %v323 = vunpack.c.h.b16 %v299
      %v324 = vunpack.c.l.b16 %v300
      %v325 = vunpack.c.h.b16 %v300
      %v326 = vunpack.c.l.b16 %v301
      %v327 = vunpack.c.h.b16 %v301
      %v328 = vpack.c.b16 %v312, %v312
      %v329 = vpack.c.b16 %v313, %v313
      %v330 = vpack.c.b16 %v314, %v314
      %v331 = vpack.c.b16 %v315, %v315
      %v332 = vpack.c.b16 %v316, %v316
      %v333 = vpack.c.b16 %v317, %v317
      %v334 = vpack.c.b16 %v318, %v318
      %v335 = vpack.c.b16 %v319, %v319
      %v336 = vpack.c.b16 %v320, %v320
      %v337 = vpack.c.b16 %v321, %v321
      %v338 = vpack.c.b16 %v322, %v322
      %v339 = vpack.c.b16 %v323, %v323
      %v340 = vpack.c.b16 %v324, %v324
      %v341 = vpack.c.b16 %v325, %v325
      %v342 = vpack.c.b16 %v326, %v326
      %v343 = vpack.c.b16 %v327, %v327
      %vm344 = vsmask.f32 3328
      %vm345 = vsmask.f32 7440
      %vm346 = vmor %vm344, %vm345
      %v348 = vshrl.u32 %v328, 16
      %v350 = vrot.slane %v348, 4
      %v351 = vshll.u32 %v328, 16
      %v353 = vrot.slane %v351, 5
      %v354 = vor.u32 %v350, %v353
      %v355 = vrot.slane %v354, 4
      %v357 = vshll.u32 %v329, 16
      %v359 = vrot.slane %v357, 5
      %v360 = vsel %vm346, %v355, %v359
      %v362 = vshrl.u32 %v330, 16
      %v364 = vrot.slane %v362, 4
      %v365 = vshll.u32 %v330, 16
      %v367 = vrot.slane %v365, 5
      %v368 = vor.u32 %v364, %v367
      %v369 = vrot.slane %v368, 4
      %v371 = vshll.u32 %v331, 16
      %v373 = vrot.slane %v371, 5
      %v374 = vsel %vm346, %v369, %v373
      %v376 = vshrl.u32 %v332, 16
      %v378 = vrot.slane %v376, 4
      %v379 = vshll.u32 %v332, 16
      %v381 = vrot.slane %v379, 5
      %v382 = vor.u32 %v378, %v381
      %v383 = vrot.slane %v382, 4
      %v385 = vshll.u32 %v333, 16
      %v387 = vrot.slane %v385, 5
      %v388 = vsel %vm346, %v383, %v387
      %v390 = vshrl.u32 %v334, 16
      %v392 = vrot.slane %v390, 4
      %v393 = vshll.u32 %v334, 16
      %v395 = vrot.slane %v393, 5
      %v396 = vor.u32 %v392, %v395
      %v397 = vrot.slane %v396, 4
      %v399 = vshll.u32 %v335, 16
      %v401 = vrot.slane %v399, 5
      %v402 = vsel %vm346, %v397, %v401
      %v404 = vshrl.u32 %v336, 16
      %v406 = vrot.slane %v404, 4
      %v407 = vshll.u32 %v336, 16
      %v409 = vrot.slane %v407, 5
      %v410 = vor.u32 %v406, %v409
      %v411 = vrot.slane %v410, 4
      %v413 = vshll.u32 %v337, 16
      %v415 = vrot.slane %v413, 5
      %v416 = vsel %vm346, %v411, %v415
      %v418 = vshrl.u32 %v338, 16
      %v420 = vrot.slane %v418, 4
      %v421 = vshll.u32 %v338, 16
      %v423 = vrot.slane %v421, 5
      %v424 = vor.u32 %v420, %v423
      %v425 = vrot.slane %v424, 4
      %v427 = vshll.u32 %v339, 16
      %v429 = vrot.slane %v427, 5
      %v430 = vsel %vm346, %v425, %v429
      %v432 = vshrl.u32 %v340, 16
      %v434 = vrot.slane %v432, 4
      %v435 = vshll.u32 %v340, 16
      %v437 = vrot.slane %v435, 5
      %v438 = vor.u32 %v434, %v437
      %v439 = vrot.slane %v438, 4
      %v441 = vshll.u32 %v341, 16
      %v443 = vrot.slane %v441, 5
      %v444 = vsel %vm346, %v439, %v443
      %v446 = vshrl.u32 %v342, 16
      %v448 = vrot.slane %v446, 4
      %v449 = vshll.u32 %v342, 16
      %v451 = vrot.slane %v449, 5
      %v452 = vor.u32 %v448, %v451
      %v453 = vrot.slane %v452, 4
      %v455 = vshll.u32 %v343, 16
      %v457 = vrot.slane %v455, 5
      %v458 = vsel %vm346, %v453, %v457
      %s459 = scalar_lea.vmem %s1, 4
      %v460 = vld [vmem:[%s459] sm:$0xf]
      %v461 = vunpack.c.l.b16 %v360
      %v462 = vunpack.c.l.b16 %v374
      %v463 = vunpack.c.l.b16 %v388
      %v464 = vunpack.c.l.b16 %v402
      %v465 = vunpack.c.l.b16 %v416
      %v466 = vunpack.c.l.b16 %v430
      %v467 = vunpack.c.l.b16 %v444
      %v468 = vunpack.c.l.b16 %v458
      %v469 = vpack.c.b16 %v462, %v461
      %v470 = vpack.c.b16 %v464, %v463
      %v471 = vpack.c.b16 %v466, %v465
      %v472 = vpack.c.b16 %v468, %v467
      %vm473 = vcmask 64512
      %v475 = vsel %vm473, %v469, 0
      %v478 = vsel %vm473, %v470, 0
      %v481 = vsel %vm473, %v471, 0
      %v484 = vsel %vm473, %v472, 0
      %vm486 = vcmask 1043456
      %v488 = vsel %vm486, %v460, 0
      %490 = vmatprep.subr.bf16.mxu0 0
      %491 = vmatpush1.bf16.msra.mxu0 %v488
      %492 = vmatprep.subr.bf16.mxu0 0
      %493 = vmatpush1.bf16.msra.mxu0 0
      %494 = vmatprep.subr.bf16.mxu0 0
      %495 = vmatpush1.bf16.msra.mxu0 0
      %496 = vmatprep.subr.bf16.mxu0 0
      %497 = vmatpush1.bf16.msra.mxu0 0
      %498 = vmatprep.subr.bf16.mxu0 0
      %499 = vmatpush1.bf16.msra.mxu0 0
      %500 = vmatprep.subr.bf16.mxu0 0
      %501 = vmatpush1.bf16.msra.mxu0 0
      %502 = vmatprep.subr.bf16.mxu0 0
      %503 = vmatpush1.bf16.msra.mxu0 0
      %504 = vmatprep.subr.bf16.mxu0 0
      %505 = vmatpush1.bf16.msra.mxu0 0
      %506 = vmatprep.subr.bf16.mxu0 0
      %507 = vmatpush1.bf16.msra.mxu0 0
      %508 = vmatprep.subr.bf16.mxu0 0
      %509 = vmatpush1.bf16.msra.mxu0 0
      %510 = vmatprep.subr.bf16.mxu0 0
      %511 = vmatpush1.bf16.msra.mxu0 0
      %512 = vmatprep.subr.bf16.mxu0 0
      %513 = vmatpush1.bf16.msra.mxu0 0
      %514 = vmatprep.subr.bf16.mxu0 0
      %515 = vmatpush1.bf16.msra.mxu0 0
      %516 = vmatprep.subr.bf16.mxu0 0
      %517 = vmatpush1.bf16.msra.mxu0 0
      %518 = vmatprep.subr.bf16.mxu0 0
      %519 = vmatpush1.bf16.msra.mxu0 0
      %520 = vmatprep.subr.bf16.mxu0 0
      %521 = vmatpush1.bf16.msra.mxu0 0
      %522 = vmatprep.mubr.bf16.mxu0 0
      %523 = vmatmul.mubr.bf16.gmra.mrb[0].mxu0 %v475
      %v524 = vpop.f32.mrb[0].mxu0
      %v525 = vadd.f32 0.0, %v524
      %v526 = vpop.f32.mrb[0].mxu0
      %v527 = vpop.f32.mrb[0].mxu0
      %v528 = vadd.f32 0.0, %v527
      %v529 = vpop.f32.mrb[0].mxu0
      %530 = vmatprep.mubr.bf16.mxu0 0
      %531 = vmatmul.mubr.bf16.gmra.mrb[0].mxu0 %v478
      %v532 = vpop.f32.mrb[0].mxu0
      %v533 = vadd.f32 0.0, %v532
      %v534 = vpop.f32.mrb[0].mxu0
      %v535 = vpop.f32.mrb[0].mxu0
      %v536 = vadd.f32 0.0, %v535
      %v537 = vpop.f32.mrb[0].mxu0
      %538 = vmatprep.mubr.bf16.mxu0 0
      %539 = vmatmul.mubr.bf16.gmra.mrb[0].mxu0 %v481
      %v540 = vpop.f32.mrb[0].mxu0
      %v541 = vadd.f32 0.0, %v540
      %v542 = vpop.f32.mrb[0].mxu0
      %v543 = vpop.f32.mrb[0].mxu0
      %v544 = vadd.f32 0.0, %v543
      %v545 = vpop.f32.mrb[0].mxu0
      %546 = vmatprep.mubr.bf16.mxu0 0
      %547 = vmatmul.mubr.bf16.gmra.mrb[0].mxu0 %v484
      %v548 = vpop.f32.mrb[0].mxu0
      %v549 = vadd.f32 0.0, %v548
      %v550 = vpop.f32.mrb[0].mxu0
      %v551 = vpop.f32.mrb[0].mxu0
      %v552 = vadd.f32 0.0, %v551
      %v553 = vpop.f32.mrb[0].mxu0
      %554 = vdwg.mxu0
      %v555 = vpack.c.b16 %v314, %v312
      %v556 = vpack.c.b16 %v318, %v316
      %v557 = vpack.c.b16 %v322, %v320
      %v558 = vpack.c.b16 %v326, %v324
      %v560 = vsel %vm473, %v555, 0
      %v563 = vsel %vm473, %v556, 0
      %v566 = vsel %vm473, %v557, 0
      %v569 = vsel %vm473, %v558, 0
      %v572 = vsel %vm486, %v303, 0
      %574 = vmatprep.subr.bf16.mxu0 0
      %575 = vmatpush1.bf16.msra.mxu0 %v572
      %576 = vmatprep.subr.bf16.mxu0 0
      %577 = vmatpush1.bf16.msra.mxu0 0
      %578 = vmatprep.subr.bf16.mxu0 0
      %579 = vmatpush1.bf16.msra.mxu0 0
      %580 = vmatprep.subr.bf16.mxu0 0
      %581 = vmatpush1.bf16.msra.mxu0 0
      %582 = vmatprep.subr.bf16.mxu0 0
      %583 = vmatpush1.bf16.msra.mxu0 0
      %584 = vmatprep.subr.bf16.mxu0 0
      %585 = vmatpush1.bf16.msra.mxu0 0
      %586 = vmatprep.subr.bf16.mxu0 0
      %587 = vmatpush1.bf16.msra.mxu0 0
      %588 = vmatprep.subr.bf16.mxu0 0
      %589 = vmatpush1.bf16.msra.mxu0 0
      %590 = vmatprep.subr.bf16.mxu0 0
      %591 = vmatpush1.bf16.msra.mxu0 0
      %592 = vmatprep.subr.bf16.mxu0 0
      %593 = vmatpush1.bf16.msra.mxu0 0
      %594 = vmatprep.subr.bf16.mxu0 0
      %595 = vmatpush1.bf16.msra.mxu0 0
      %596 = vmatprep.subr.bf16.mxu0 0
      %597 = vmatpush1.bf16.msra.mxu0 0
      %598 = vmatprep.subr.bf16.mxu0 0
      %599 = vmatpush1.bf16.msra.mxu0 0
      %600 = vmatprep.subr.bf16.mxu0 0
      %601 = vmatpush1.bf16.msra.mxu0 0
      %602 = vmatprep.subr.bf16.mxu0 0
      %603 = vmatpush1.bf16.msra.mxu0 0
      %604 = vmatprep.subr.bf16.mxu0 0
      %605 = vmatpush1.bf16.msra.mxu0 0
      %606 = vmatprep.mubr.bf16.mxu0 0
      %607 = vmatmul.mubr.bf16.gmra.mrb[0].mxu0 %v560
      %v608 = vpop.f32.mrb[0].mxu0
      %v609 = vadd.f32 %v525, %v608
      %v610 = vpop.f32.mrb[0].mxu0
      %v611 = vpop.f32.mrb[0].mxu0
      %v612 = vadd.f32 %v528, %v611
      %v613 = vpop.f32.mrb[0].mxu0
      %614 = vmatprep.mubr.bf16.mxu0 0
      %615 = vmatmul.mubr.bf16.gmra.mrb[0].mxu0 %v563
      %v616 = vpop.f32.mrb[0].mxu0
      %v617 = vadd.f32 %v533, %v616
      %v618 = vpop.f32.mrb[0].mxu0
      %v619 = vpop.f32.mrb[0].mxu0
      %v620 = vadd.f32 %v536, %v619
      %v621 = vpop.f32.mrb[0].mxu0
      %622 = vmatprep.mubr.bf16.mxu0 0
      %623 = vmatmul.mubr.bf16.gmra.mrb[0].mxu0 %v566
      %v624 = vpop.f32.mrb[0].mxu0
      %v625 = vadd.f32 %v541, %v624
      %v626 = vpop.f32.mrb[0].mxu0
      %v627 = vpop.f32.mrb[0].mxu0
      %v628 = vadd.f32 %v544, %v627
      %v629 = vpop.f32.mrb[0].mxu0
      %630 = vmatprep.mubr.bf16.mxu0 0
      %631 = vmatmul.mubr.bf16.gmra.mrb[0].mxu0 %v569
      %v632 = vpop.f32.mrb[0].mxu0
      %v633 = vadd.f32 %v549, %v632
      %v634 = vpop.f32.mrb[0].mxu0
      %v635 = vpop.f32.mrb[0].mxu0
      %v636 = vadd.f32 %v552, %v635
      %v637 = vpop.f32.mrb[0].mxu0
      %638 = vdwg.mxu0
      %vm639 = vcmask 1042432
      %vm640 = vcmask 1046532
      %vm641 = vmor %vm639, %vm640
      %v642 = vrot.slane %v328, 5
      %v643 = vrot.slane %v642, 4
      %v644 = vrot.slane %v329, 5
      %v645 = vsel %vm641, %v643, %v644
      %v646 = vrot.slane %v330, 5
      %v647 = vrot.slane %v646, 4
      %v648 = vrot.slane %v331, 5
      %v649 = vsel %vm641, %v647, %v648
      %v650 = vrot.slane %v332, 5
      %v651 = vrot.slane %v650, 4
      %v652 = vrot.slane %v333, 5
      %v653 = vsel %vm641, %v651, %v652
      %v654 = vrot.slane %v334, 5
      %v655 = vrot.slane %v654, 4
      %v656 = vrot.slane %v335, 5
      %v657 = vsel %vm641, %v655, %v656
      %v658 = vrot.slane %v336, 5
      %v659 = vrot.slane %v658, 4
      %v660 = vrot.slane %v337, 5
      %v661 = vsel %vm641, %v659, %v660
      %v662 = vrot.slane %v338, 5
      %v663 = vrot.slane %v662, 4
      %v664 = vrot.slane %v339, 5
      %v665 = vsel %vm641, %v663, %v664
      %v666 = vrot.slane %v340, 5
      %v667 = vrot.slane %v666, 4
      %v668 = vrot.slane %v341, 5
      %v669 = vsel %vm641, %v667, %v668
      %v670 = vrot.slane %v342, 5
      %v671 = vrot.slane %v670, 4
      %v672 = vrot.slane %v343, 5
      %v673 = vsel %vm641, %v671, %v672
      %s674 = scalar_lea.vmem %s1, 8
      %v675 = vld [vmem:[%s674] sm:$0xf]
      %v676 = vunpack.c.l.b16 %v645
      %v677 = vunpack.c.l.b16 %v649
      %v678 = vunpack.c.l.b16 %v653
      %v679 = vunpack.c.l.b16 %v657
      %v680 = vunpack.c.l.b16 %v661
      %v681 = vunpack.c.l.b16 %v665
      %v682 = vunpack.c.l.b16 %v669
      %v683 = vunpack.c.l.b16 %v673
      %v684 = vpack.c.b16 %v677, %v676
      %v685 = vpack.c.b16 %v679, %v678
      %v686 = vpack.c.b16 %v681, %v680
      %v687 = vpack.c.b16 %v683, %v682
      %v689 = vsel %vm473, %v684, 0
      %v692 = vsel %vm473, %v685, 0
      %v695 = vsel %vm473, %v686, 0
      %v698 = vsel %vm473, %v687, 0
      %v701 = vsel %vm486, %v675, 0
      %703 = vmatprep.subr.bf16.mxu0 0
      %704 = vmatpush1.bf16.msra.mxu0 %v701
      %705 = vmatprep.subr.bf16.mxu0 0
      %706 = vmatpush1.bf16.msra.mxu0 0
      %707 = vmatprep.subr.bf16.mxu0 0
      %708 = vmatpush1.bf16.msra.mxu0 0
      %709 = vmatprep.subr.bf16.mxu0 0
      %710 = vmatpush1.bf16.msra.mxu0 0
      %711 = vmatprep.subr.bf16.mxu0 0
      %712 = vmatpush1.bf16.msra.mxu0 0
      %713 = vmatprep.subr.bf16.mxu0 0
      %714 = vmatpush1.bf16.msra.mxu0 0
      %715 = vmatprep.subr.bf16.mxu0 0
      %716 = vmatpush1.bf16.msra.mxu0 0
      %717 = vmatprep.subr.bf16.mxu0 0
      %718 = vmatpush1.bf16.msra.mxu0 0
      %719 = vmatprep.subr.bf16.mxu0 0
      %720 = vmatpush1.bf16.msra.mxu0 0
      %721 = vmatprep.subr.bf16.mxu0 0
      %722 = vmatpush1.bf16.msra.mxu0 0
      %723 = vmatprep.subr.bf16.mxu0 0
      %724 = vmatpush1.bf16.msra.mxu0 0
      %725 = vmatprep.subr.bf16.mxu0 0
      %726 = vmatpush1.bf16.msra.mxu0 0
      %727 = vmatprep.subr.bf16.mxu0 0
      %728 = vmatpush1.bf16.msra.mxu0 0
      %729 = vmatprep.subr.bf16.mxu0 0
      %730 = vmatpush1.bf16.msra.mxu0 0
      %731 = vmatprep.subr.bf16.mxu0 0
      %732 = vmatpush1.bf16.msra.mxu0 0
      %733 = vmatprep.subr.bf16.mxu0 0
      %734 = vmatpush1.bf16.msra.mxu0 0
      %735 = vmatprep.mubr.bf16.mxu0 0
      %736 = vmatmul.mubr.bf16.gmra.mrb[0].mxu0 %v689
      %v737 = vpop.f32.mrb[0].mxu0
      %v738 = vadd.f32 0.0, %v737
      %v739 = vpop.f32.mrb[0].mxu0
      %v740 = vpop.f32.mrb[0].mxu0
      %v741 = vadd.f32 0.0, %v740
      %v742 = vpop.f32.mrb[0].mxu0
      %743 = vmatprep.mubr.bf16.mxu0 0
      %744 = vmatmul.mubr.bf16.gmra.mrb[0].mxu0 %v692
      %v745 = vpop.f32.mrb[0].mxu0
      %v746 = vadd.f32 0.0, %v745
      %v747 = vpop.f32.mrb[0].mxu0
      %v748 = vpop.f32.mrb[0].mxu0
      %v749 = vadd.f32 0.0, %v748
      %v750 = vpop.f32.mrb[0].mxu0
      %751 = vmatprep.mubr.bf16.mxu0 0
      %752 = vmatmul.mubr.bf16.gmra.mrb[0].mxu0 %v695
      %v753 = vpop.f32.mrb[0].mxu0
      %v754 = vadd.f32 0.0, %v753
      %v755 = vpop.f32.mrb[0].mxu0
      %v756 = vpop.f32.mrb[0].mxu0
      %v757 = vadd.f32 0.0, %v756
      %v758 = vpop.f32.mrb[0].mxu0
      %759 = vmatprep.mubr.bf16.mxu0 0
      %760 = vmatmul.mubr.bf16.gmra.mrb[0].mxu0 %v698
      %v761 = vpop.f32.mrb[0].mxu0
      %v762 = vadd.f32 0.0, %v761
      %v763 = vpop.f32.mrb[0].mxu0
      %v764 = vpop.f32.mrb[0].mxu0
      %v765 = vadd.f32 0.0, %v764
      %v766 = vpop.f32.mrb[0].mxu0
      %767 = vdwg.mxu0
      %v768 = vadd.f32 %v609, %v738
      %v769 = vadd.f32 %v612, %v741
      %v770 = vadd.f32 %v617, %v746
      %v771 = vadd.f32 %v620, %v749
      %v772 = vadd.f32 %v625, %v754
      %v773 = vadd.f32 %v628, %v757
      %v774 = vadd.f32 %v633, %v762
      %v775 = vadd.f32 %v636, %v765
      %s776 = scalar_lea.vmem %s1, 12
      %v777 = vld [vmem:[%s776] sm:$0xf]
      %v779 = vunpack.c.l.b16 %v302
      %v780 = vpack.c.b16 %v316, %v314
      %v781 = vpack.c.b16 %v320, %v318
      %v782 = vpack.c.b16 %v324, %v322
      %v783 = vpack.c.b16 %v779, %v326
      %v785 = vsel %vm473, %v780, 0
      %v788 = vsel %vm473, %v781, 0
      %v791 = vsel %vm473, %v782, 0
      %v794 = vsel %vm473, %v783, 0
      %v797 = vsel %vm486, %v777, 0
      %799 = vmatprep.subr.bf16.mxu0 0
      %800 = vmatpush1.bf16.msra.mxu0 %v797
      %801 = vmatprep.subr.bf16.mxu0 0
      %802 = vmatpush1.bf16.msra.mxu0 0
      %803 = vmatprep.subr.bf16.mxu0 0
      %804 = vmatpush1.bf16.msra.mxu0 0
      %805 = vmatprep.subr.bf16.mxu0 0
      %806 = vmatpush1.bf16.msra.mxu0 0
      %807 = vmatprep.subr.bf16.mxu0 0
      %808 = vmatpush1.bf16.msra.mxu0 0
      %809 = vmatprep.subr.bf16.mxu0 0
      %810 = vmatpush1.bf16.msra.mxu0 0
      %811 = vmatprep.subr.bf16.mxu0 0
      %812 = vmatpush1.bf16.msra.mxu0 0
      %813 = vmatprep.subr.bf16.mxu0 0
      %814 = vmatpush1.bf16.msra.mxu0 0
      %815 = vmatprep.subr.bf16.mxu0 0
      %816 = vmatpush1.bf16.msra.mxu0 0
      %817 = vmatprep.subr.bf16.mxu0 0
      %818 = vmatpush1.bf16.msra.mxu0 0
      %819 = vmatprep.subr.bf16.mxu0 0
      %820 = vmatpush1.bf16.msra.mxu0 0
      %821 = vmatprep.subr.bf16.mxu0 0
      %822 = vmatpush1.bf16.msra.mxu0 0
      %823 = vmatprep.subr.bf16.mxu0 0
      %824 = vmatpush1.bf16.msra.mxu0 0
      %825 = vmatprep.subr.bf16.mxu0 0
      %826 = vmatpush1.bf16.msra.mxu0 0
      %827 = vmatprep.subr.bf16.mxu0 0
      %828 = vmatpush1.bf16.msra.mxu0 0
      %829 = vmatprep.subr.bf16.mxu0 0
      %830 = vmatpush1.bf16.msra.mxu0 0
      %831 = vmatprep.mubr.bf16.mxu0 0
      %832 = vmatmul.mubr.bf16.gmra.mrb[0].mxu0 %v785
      %v833 = vpop.f32.mrb[0].mxu0
      %v834 = vadd.f32 0.0, %v833
      %v835 = vpop.f32.mrb[0].mxu0
      %v836 = vpop.f32.mrb[0].mxu0
      %v837 = vadd.f32 0.0, %v836
      %v838 = vpop.f32.mrb[0].mxu0
      %839 = vmatprep.mubr.bf16.mxu0 0
      %840 = vmatmul.mubr.bf16.gmra.mrb[0].mxu0 %v788
      %v841 = vpop.f32.mrb[0].mxu0
      %v842 = vadd.f32 0.0, %v841
      %v843 = vpop.f32.mrb[0].mxu0
      %v844 = vpop.f32.mrb[0].mxu0
      %v845 = vadd.f32 0.0, %v844
      %v846 = vpop.f32.mrb[0].mxu0
      %847 = vmatprep.mubr.bf16.mxu0 0
      %848 = vmatmul.mubr.bf16.gmra.mrb[0].mxu0 %v791
      %v849 = vpop.f32.mrb[0].mxu0
      %v850 = vadd.f32 0.0, %v849
      %v851 = vpop.f32.mrb[0].mxu0
      %v852 = vpop.f32.mrb[0].mxu0
      %v853 = vadd.f32 0.0, %v852
      %v854 = vpop.f32.mrb[0].mxu0
      %855 = vmatprep.mubr.bf16.mxu0 0
      %856 = vmatmul.mubr.bf16.gmra.mrb[0].mxu0 %v794
      %v857 = vpop.f32.mrb[0].mxu0
      %v858 = vadd.f32 0.0, %v857
      %v859 = vpop.f32.mrb[0].mxu0
      %v860 = vpop.f32.mrb[0].mxu0
      %v861 = vadd.f32 0.0, %v860
      %v862 = vpop.f32.mrb[0].mxu0
      %863 = vdwg.mxu0
      %v864 = vadd.f32 %v768, %v834
      %v865 = vadd.f32 %v769, %v837
      %v866 = vadd.f32 %v770, %v842
      %v867 = vadd.f32 %v771, %v845
      %v868 = vadd.f32 %v772, %v850
      %v869 = vadd.f32 %v773, %v853
      %v870 = vadd.f32 %v774, %v858
      %v871 = vadd.f32 %v775, %v861
      %v872 = vunpack.c.h.b16 %v302
      %v873 = vpack.c.b16 %v779, %v779
      %v874 = vpack.c.b16 %v872, %v872
      %v876 = vshrl.u32 %v873, 16
      %v878 = vrot.slane %v876, 4
      %v879 = vshll.u32 %v873, 16
      %v881 = vrot.slane %v879, 5
      %v882 = vor.u32 %v878, %v881
      %v883 = vrot.slane %v882, 4
      %v885 = vshll.u32 %v874, 16
      %v887 = vrot.slane %v885, 5
      %v888 = vsel %vm346, %v883, %v887
      %s889 = scalar_lea.vmem %s1, 16
      %v890 = vld [vmem:[%s889] sm:$0xf]
      %v891 = vunpack.c.l.b16 %v888
      %v892 = vpack.c.b16 %v463, %v462
      %v893 = vpack.c.b16 %v465, %v464
      %v894 = vpack.c.b16 %v467, %v466
      %v895 = vpack.c.b16 %v891, %v468
      %v897 = vsel %vm473, %v892, 0
      %v900 = vsel %vm473, %v893, 0
      %v903 = vsel %vm473, %v894, 0
      %v906 = vsel %vm473, %v895, 0
      %v909 = vsel %vm486, %v890, 0
      %911 = vmatprep.subr.bf16.mxu0 0
      %912 = vmatpush1.bf16.msra.mxu0 %v909
      %913 = vmatprep.subr.bf16.mxu0 0
      %914 = vmatpush1.bf16.msra.mxu0 0
      %915 = vmatprep.subr.bf16.mxu0 0
      %916 = vmatpush1.bf16.msra.mxu0 0
      %917 = vmatprep.subr.bf16.mxu0 0
      %918 = vmatpush1.bf16.msra.mxu0 0
      %919 = vmatprep.subr.bf16.mxu0 0
      %920 = vmatpush1.bf16.msra.mxu0 0
      %921 = vmatprep.subr.bf16.mxu0 0
      %922 = vmatpush1.bf16.msra.mxu0 0
      %923 = vmatprep.subr.bf16.mxu0 0
      %924 = vmatpush1.bf16.msra.mxu0 0
      %925 = vmatprep.subr.bf16.mxu0 0
      %926 = vmatpush1.bf16.msra.mxu0 0
      %927 = vmatprep.subr.bf16.mxu0 0
      %928 = vmatpush1.bf16.msra.mxu0 0
      %929 = vmatprep.subr.bf16.mxu0 0
      %930 = vmatpush1.bf16.msra.mxu0 0
      %931 = vmatprep.subr.bf16.mxu0 0
      %932 = vmatpush1.bf16.msra.mxu0 0
      %933 = vmatprep.subr.bf16.mxu0 0
      %934 = vmatpush1.bf16.msra.mxu0 0
      %935 = vmatprep.subr.bf16.mxu0 0
      %936 = vmatpush1.bf16.msra.mxu0 0
      %937 = vmatprep.subr.bf16.mxu0 0
      %938 = vmatpush1.bf16.msra.mxu0 0
      %939 = vmatprep.subr.bf16.mxu0 0
      %940 = vmatpush1.bf16.msra.mxu0 0
      %941 = vmatprep.subr.bf16.mxu0 0
      %942 = vmatpush1.bf16.msra.mxu0 0
      %943 = vmatprep.mubr.bf16.mxu0 0
      %944 = vmatmul.mubr.bf16.gmra.mrb[0].mxu0 %v897
      %v945 = vpop.f32.mrb[0].mxu0
      %v946 = vadd.f32 0.0, %v945
      %v947 = vpop.f32.mrb[0].mxu0
      %v948 = vpop.f32.mrb[0].mxu0
      %v949 = vadd.f32 0.0, %v948
      %v950 = vpop.f32.mrb[0].mxu0
      %951 = vmatprep.mubr.bf16.mxu0 0
      %952 = vmatmul.mubr.bf16.gmra.mrb[0].mxu0 %v900
      %v953 = vpop.f32.mrb[0].mxu0
      %v954 = vadd.f32 0.0, %v953
      %v955 = vpop.f32.mrb[0].mxu0
      %v956 = vpop.f32.mrb[0].mxu0
      %v957 = vadd.f32 0.0, %v956
      %v958 = vpop.f32.mrb[0].mxu0
      %959 = vmatprep.mubr.bf16.mxu0 0
      %960 = vmatmul.mubr.bf16.gmra.mrb[0].mxu0 %v903
      %v961 = vpop.f32.mrb[0].mxu0
      %v962 = vadd.f32 0.0, %v961
      %v963 = vpop.f32.mrb[0].mxu0
      %v964 = vpop.f32.mrb[0].mxu0
      %v965 = vadd.f32 0.0, %v964
      %v966 = vpop.f32.mrb[0].mxu0
      %967 = vmatprep.mubr.bf16.mxu0 0
      %968 = vmatmul.mubr.bf16.gmra.mrb[0].mxu0 %v906
      %v969 = vpop.f32.mrb[0].mxu0
      %v970 = vadd.f32 0.0, %v969
      %v971 = vpop.f32.mrb[0].mxu0
      %v972 = vpop.f32.mrb[0].mxu0
      %v973 = vadd.f32 0.0, %v972
      %v974 = vpop.f32.mrb[0].mxu0
      %975 = vdwg.mxu0
      %v976 = vadd.f32 %v864, %v946
      %v977 = vadd.f32 %v865, %v949
      %v978 = vadd.f32 %v866, %v954
      %v979 = vadd.f32 %v867, %v957
      %v980 = vadd.f32 %v868, %v962
      %v981 = vadd.f32 %v869, %v965
      %v982 = vadd.f32 %v870, %v970
      %v983 = vadd.f32 %v871, %v973
      %v984 = vrot.slane %v873, 5
      %v985 = vrot.slane %v984, 4
      %v986 = vrot.slane %v874, 5
      %v987 = vsel %vm641, %v985, %v986
      %s988 = scalar_lea.vmem %s1, 20
      %v989 = vld [vmem:[%s988] sm:$0xf]
      %v990 = vunpack.c.l.b16 %v987
      %v991 = vpack.c.b16 %v678, %v677
      %v992 = vpack.c.b16 %v680, %v679
      %v993 = vpack.c.b16 %v682, %v681
      %v994 = vpack.c.b16 %v990, %v683
      %v996 = vsel %vm473, %v991, 0
      %v999 = vsel %vm473, %v992, 0
      %v1002 = vsel %vm473, %v993, 0
      %v1005 = vsel %vm473, %v994, 0
      %v1008 = vsel %vm486, %v989, 0
      %1010 = vmatprep.subr.bf16.mxu0 0
      %1011 = vmatpush1.bf16.msra.mxu0 %v1008
      %1012 = vmatprep.subr.bf16.mxu0 0
      %1013 = vmatpush1.bf16.msra.mxu0 0
      %1014 = vmatprep.subr.bf16.mxu0 0
      %1015 = vmatpush1.bf16.msra.mxu0 0
      %1016 = vmatprep.subr.bf16.mxu0 0
      %1017 = vmatpush1.bf16.msra.mxu0 0
      %1018 = vmatprep.subr.bf16.mxu0 0
      %1019 = vmatpush1.bf16.msra.mxu0 0
      %1020 = vmatprep.subr.bf16.mxu0 0
      %1021 = vmatpush1.bf16.msra.mxu0 0
      %1022 = vmatprep.subr.bf16.mxu0 0
      %1023 = vmatpush1.bf16.msra.mxu0 0
      %1024 = vmatprep.subr.bf16.mxu0 0
      %1025 = vmatpush1.bf16.msra.mxu0 0
      %1026 = vmatprep.subr.bf16.mxu0 0
      %1027 = vmatpush1.bf16.msra.mxu0 0
      %1028 = vmatprep.subr.bf16.mxu0 0
      %1029 = vmatpush1.bf16.msra.mxu0 0
      %1030 = vmatprep.subr.bf16.mxu0 0
      %1031 = vmatpush1.bf16.msra.mxu0 0
      %1032 = vmatprep.subr.bf16.mxu0 0
      %1033 = vmatpush1.bf16.msra.mxu0 0
      %1034 = vmatprep.subr.bf16.mxu0 0
      %1035 = vmatpush1.bf16.msra.mxu0 0
      %1036 = vmatprep.subr.bf16.mxu0 0
      %1037 = vmatpush1.bf16.msra.mxu0 0
      %1038 = vmatprep.subr.bf16.mxu0 0
      %1039 = vmatpush1.bf16.msra.mxu0 0
      %1040 = vmatprep.subr.bf16.mxu0 0
      %1041 = vmatpush1.bf16.msra.mxu0 0
      %1042 = vmatprep.mubr.bf16.mxu0 0
      %1043 = vmatmul.mubr.bf16.gmra.mrb[0].mxu0 %v996
      %v1044 = vpop.f32.mrb[0].mxu0
      %v1045 = vadd.f32 0.0, %v1044
      %v1046 = vpop.f32.mrb[0].mxu0
      %v1047 = vpop.f32.mrb[0].mxu0
      %v1048 = vadd.f32 0.0, %v1047
      %v1049 = vpop.f32.mrb[0].mxu0
      %1050 = vmatprep.mubr.bf16.mxu0 0
      %1051 = vmatmul.mubr.bf16.gmra.mrb[0].mxu0 %v999
      %v1052 = vpop.f32.mrb[0].mxu0
      %v1053 = vadd.f32 0.0, %v1052
      %v1054 = vpop.f32.mrb[0].mxu0
      %v1055 = vpop.f32.mrb[0].mxu0
      %v1056 = vadd.f32 0.0, %v1055
      %v1057 = vpop.f32.mrb[0].mxu0
      %1058 = vmatprep.mubr.bf16.mxu0 0
      %1059 = vmatmul.mubr.bf16.gmra.mrb[0].mxu0 %v1002
      %v1060 = vpop.f32.mrb[0].mxu0
      %v1061 = vadd.f32 0.0, %v1060
      %v1062 = vpop.f32.mrb[0].mxu0
      %v1063 = vpop.f32.mrb[0].mxu0
      %v1064 = vadd.f32 0.0, %v1063
      %v1065 = vpop.f32.mrb[0].mxu0
      %1066 = vmatprep.mubr.bf16.mxu0 0
      %1067 = vmatmul.mubr.bf16.gmra.mrb[0].mxu0 %v1005
      %v1068 = vpop.f32.mrb[0].mxu0
      %v1069 = vadd.f32 0.0, %v1068
      %v1070 = vpop.f32.mrb[0].mxu0
      %v1071 = vpop.f32.mrb[0].mxu0
      %v1072 = vadd.f32 0.0, %v1071
      %v1073 = vpop.f32.mrb[0].mxu0
      %1074 = vdwg.mxu0
      %v1075 = vadd.f32 %v976, %v1045
      %v1076 = vadd.f32 %v977, %v1048
      %v1077 = vadd.f32 %v978, %v1053
      %v1078 = vadd.f32 %v979, %v1056
      %v1079 = vadd.f32 %v980, %v1061
      %v1080 = vadd.f32 %v981, %v1064
      %v1081 = vadd.f32 %v982, %v1069
      %v1082 = vadd.f32 %v983, %v1072
      %s1083 = scalar_lea.vmem %s1, 24
      %v1084 = vld [vmem:[%s1083] sm:$0xf]
      %v1085 = vpack.c.b16 %v312, %v779
      %v1087 = vsel %vm473, %v1085, 0
      %v1090 = vsel %vm486, %v1084, 0
      %1092 = vmatprep.subr.bf16.mxu0 0
      %1093 = vmatpush1.bf16.msra.mxu0 %v1090
      %1094 = vmatprep.subr.bf16.mxu0 0
      %1095 = vmatpush1.bf16.msra.mxu0 0
      %1096 = vmatprep.subr.bf16.mxu0 0
      %1097 = vmatpush1.bf16.msra.mxu0 0
      %1098 = vmatprep.subr.bf16.mxu0 0
      %1099 = vmatpush1.bf16.msra.mxu0 0
      %1100 = vmatprep.subr.bf16.mxu0 0
      %1101 = vmatpush1.bf16.msra.mxu0 0
      %1102 = vmatprep.subr.bf16.mxu0 0
      %1103 = vmatpush1.bf16.msra.mxu0 0
      %1104 = vmatprep.subr.bf16.mxu0 0
      %1105 = vmatpush1.bf16.msra.mxu0 0
      %1106 = vmatprep.subr.bf16.mxu0 0
      %1107 = vmatpush1.bf16.msra.mxu0 0
      %1108 = vmatprep.subr.bf16.mxu0 0
      %1109 = vmatpush1.bf16.msra.mxu0 0
      %1110 = vmatprep.subr.bf16.mxu0 0
      %1111 = vmatpush1.bf16.msra.mxu0 0
      %1112 = vmatprep.subr.bf16.mxu0 0
      %1113 = vmatpush1.bf16.msra.mxu0 0
      %1114 = vmatprep.subr.bf16.mxu0 0
      %1115 = vmatpush1.bf16.msra.mxu0 0
      %1116 = vmatprep.subr.bf16.mxu0 0
      %1117 = vmatpush1.bf16.msra.mxu0 0
      %1118 = vmatprep.subr.bf16.mxu0 0
      %1119 = vmatpush1.bf16.msra.mxu0 0
      %1120 = vmatprep.subr.bf16.mxu0 0
      %1121 = vmatpush1.bf16.msra.mxu0 0
      %1122 = vmatprep.subr.bf16.mxu0 0
      %1123 = vmatpush1.bf16.msra.mxu0 0
      %1124 = vmatprep.mubr.bf16.mxu0 0
      %1125 = vmatmul.mubr.bf16.gmra.mrb[0].mxu0 %v563
      %v1126 = vpop.f32.mrb[0].mxu0
      %v1127 = vadd.f32 0.0, %v1126
      %v1128 = vpop.f32.mrb[0].mxu0
      %v1129 = vpop.f32.mrb[0].mxu0
      %v1130 = vadd.f32 0.0, %v1129
      %v1131 = vpop.f32.mrb[0].mxu0
      %1132 = vmatprep.mubr.bf16.mxu0 0
      %1133 = vmatmul.mubr.bf16.gmra.mrb[0].mxu0 %v566
      %v1134 = vpop.f32.mrb[0].mxu0
      %v1135 = vadd.f32 0.0, %v1134
      %v1136 = vpop.f32.mrb[0].mxu0
      %v1137 = vpop.f32.mrb[0].mxu0
      %v1138 = vadd.f32 0.0, %v1137
      %v1139 = vpop.f32.mrb[0].mxu0
      %1140 = vmatprep.mubr.bf16.mxu0 0
      %1141 = vmatmul.mubr.bf16.gmra.mrb[0].mxu0 %v569
      %v1142 = vpop.f32.mrb[0].mxu0
      %v1143 = vadd.f32 0.0, %v1142
      %v1144 = vpop.f32.mrb[0].mxu0
      %v1145 = vpop.f32.mrb[0].mxu0
      %v1146 = vadd.f32 0.0, %v1145
      %v1147 = vpop.f32.mrb[0].mxu0
      %1148 = vmatprep.mubr.bf16.mxu0 0
      %1149 = vmatmul.mubr.bf16.gmra.mrb[0].mxu0 %v1087
      %v1150 = vpop.f32.mrb[0].mxu0
      %v1151 = vadd.f32 0.0, %v1150
      %v1152 = vpop.f32.mrb[0].mxu0
      %v1153 = vpop.f32.mrb[0].mxu0
      %v1154 = vadd.f32 0.0, %v1153
      %v1155 = vpop.f32.mrb[0].mxu0
      %1156 = vdwg.mxu0
      %v1157 = vadd.f32 %v1075, %v1127
      %v1158 = vadd.f32 %v1076, %v1130
      %v1159 = vadd.f32 %v1077, %v1135
      %v1160 = vadd.f32 %v1078, %v1138
      %v1161 = vadd.f32 %v1079, %v1143
      %v1162 = vadd.f32 %v1080, %v1146
      %v1163 = vadd.f32 %v1081, %v1151
      %v1164 = vadd.f32 %v1082, %v1154
      %s1165 = scalar_lea.vmem %s1, 28
      %v1166 = vld [vmem:[%s1165] sm:$0xf]
      %v1167 = vpack.c.b16 %v461, %v891
      %v1169 = vsel %vm473, %v1167, 0
      %v1172 = vsel %vm486, %v1166, 0
      %1174 = vmatprep.subr.bf16.mxu0 0
      %1175 = vmatpush1.bf16.msra.mxu0 %v1172
      %1176 = vmatprep.subr.bf16.mxu0 0
      %1177 = vmatpush1.bf16.msra.mxu0 0
      %1178 = vmatprep.subr.bf16.mxu0 0
      %1179 = vmatpush1.bf16.msra.mxu0 0
      %1180 = vmatprep.subr.bf16.mxu0 0
      %1181 = vmatpush1.bf16.msra.mxu0 0
      %1182 = vmatprep.subr.bf16.mxu0 0
      %1183 = vmatpush1.bf16.msra.mxu0 0
      %1184 = vmatprep.subr.bf16.mxu0 0
      %1185 = vmatpush1.bf16.msra.mxu0 0
      %1186 = vmatprep.subr.bf16.mxu0 0
      %1187 = vmatpush1.bf16.msra.mxu0 0
      %1188 = vmatprep.subr.bf16.mxu0 0
      %1189 = vmatpush1.bf16.msra.mxu0 0
      %1190 = vmatprep.subr.bf16.mxu0 0
      %1191 = vmatpush1.bf16.msra.mxu0 0
      %1192 = vmatprep.subr.bf16.mxu0 0
      %1193 = vmatpush1.bf16.msra.mxu0 0
      %1194 = vmatprep.subr.bf16.mxu0 0
      %1195 = vmatpush1.bf16.msra.mxu0 0
      %1196 = vmatprep.subr.bf16.mxu0 0
      %1197 = vmatpush1.bf16.msra.mxu0 0
      %1198 = vmatprep.subr.bf16.mxu0 0
      %1199 = vmatpush1.bf16.msra.mxu0 0
      %1200 = vmatprep.subr.bf16.mxu0 0
      %1201 = vmatpush1.bf16.msra.mxu0 0
      %1202 = vmatprep.subr.bf16.mxu0 0
      %1203 = vmatpush1.bf16.msra.mxu0 0
      %1204 = vmatprep.subr.bf16.mxu0 0
      %1205 = vmatpush1.bf16.msra.mxu0 0
      %1206 = vmatprep.mubr.bf16.mxu0 0
      %1207 = vmatmul.mubr.bf16.gmra.mrb[0].mxu0 %v478
      %v1208 = vpop.f32.mrb[0].mxu0
      %v1209 = vadd.f32 0.0, %v1208
      %v1210 = vpop.f32.mrb[0].mxu0
      %v1211 = vpop.f32.mrb[0].mxu0
      %v1212 = vadd.f32 0.0, %v1211
      %v1213 = vpop.f32.mrb[0].mxu0
      %1214 = vmatprep.mubr.bf16.mxu0 0
      %1215 = vmatmul.mubr.bf16.gmra.mrb[0].mxu0 %v481
      %v1216 = vpop.f32.mrb[0].mxu0
      %v1217 = vadd.f32 0.0, %v1216
      %v1218 = vpop.f32.mrb[0].mxu0
      %v1219 = vpop.f32.mrb[0].mxu0
      %v1220 = vadd.f32 0.0, %v1219
      %v1221 = vpop.f32.mrb[0].mxu0
      %1222 = vmatprep.mubr.bf16.mxu0 0
      %1223 = vmatmul.mubr.bf16.gmra.mrb[0].mxu0 %v484
      %v1224 = vpop.f32.mrb[0].mxu0
      %v1225 = vadd.f32 0.0, %v1224
      %v1226 = vpop.f32.mrb[0].mxu0
      %v1227 = vpop.f32.mrb[0].mxu0
      %v1228 = vadd.f32 0.0, %v1227
      %v1229 = vpop.f32.mrb[0].mxu0
      %1230 = vmatprep.mubr.bf16.mxu0 0
      %1231 = vmatmul.mubr.bf16.gmra.mrb[0].mxu0 %v1169
      %v1232 = vpop.f32.mrb[0].mxu0
      %v1233 = vadd.f32 0.0, %v1232
      %v1234 = vpop.f32.mrb[0].mxu0
      %v1235 = vpop.f32.mrb[0].mxu0
      %v1236 = vadd.f32 0.0, %v1235
      %v1237 = vpop.f32.mrb[0].mxu0
      %1238 = vdwg.mxu0
      %v1239 = vadd.f32 %v1157, %v1209
      %v1240 = vadd.f32 %v1158, %v1212
      %v1241 = vadd.f32 %v1159, %v1217
      %v1242 = vadd.f32 %v1160, %v1220
      %v1243 = vadd.f32 %v1161, %v1225
      %v1244 = vadd.f32 %v1162, %v1228
      %v1245 = vadd.f32 %v1163, %v1233
      %v1246 = vadd.f32 %v1164, %v1236
      %s1247 = scalar_lea.vmem %s1, 32
      %v1248 = vld [vmem:[%s1247] sm:$0xf]
      %v1249 = vpack.c.b16 %v676, %v990
      %v1251 = vsel %vm473, %v1249, 0
      %v1254 = vsel %vm486, %v1248, 0
      %1256 = vmatprep.subr.bf16.mxu0 0
      %1257 = vmatpush1.bf16.msra.mxu0 %v1254
      %1258 = vmatprep.subr.bf16.mxu0 0
      %1259 = vmatpush1.bf16.msra.mxu0 0
      %1260 = vmatprep.subr.bf16.mxu0 0
      %1261 = vmatpush1.bf16.msra.mxu0 0
      %1262 = vmatprep.subr.bf16.mxu0 0
      %1263 = vmatpush1.bf16.msra.mxu0 0
      %1264 = vmatprep.subr.bf16.mxu0 0
      %1265 = vmatpush1.bf16.msra.mxu0 0
      %1266 = vmatprep.subr.bf16.mxu0 0
      %1267 = vmatpush1.bf16.msra.mxu0 0
      %1268 = vmatprep.subr.bf16.mxu0 0
      %1269 = vmatpush1.bf16.msra.mxu0 0
      %1270 = vmatprep.subr.bf16.mxu0 0
      %1271 = vmatpush1.bf16.msra.mxu0 0
      %1272 = vmatprep.subr.bf16.mxu0 0
      %1273 = vmatpush1.bf16.msra.mxu0 0
      %1274 = vmatprep.subr.bf16.mxu0 0
      %1275 = vmatpush1.bf16.msra.mxu0 0
      %1276 = vmatprep.subr.bf16.mxu0 0
      %1277 = vmatpush1.bf16.msra.mxu0 0
      %1278 = vmatprep.subr.bf16.mxu0 0
      %1279 = vmatpush1.bf16.msra.mxu0 0
      %1280 = vmatprep.subr.bf16.mxu0 0
      %1281 = vmatpush1.bf16.msra.mxu0 0
      %1282 = vmatprep.subr.bf16.mxu0 0
      %1283 = vmatpush1.bf16.msra.mxu0 0
      %1284 = vmatprep.subr.bf16.mxu0 0
      %1285 = vmatpush1.bf16.msra.mxu0 0
      %1286 = vmatprep.subr.bf16.mxu0 0
      %1287 = vmatpush1.bf16.msra.mxu0 0
      %1288 = vmatprep.mubr.bf16.mxu0 0
      %1289 = vmatmul.mubr.bf16.gmra.mrb[0].mxu0 %v692
      %v1290 = vpop.f32.mrb[0].mxu0
      %v1291 = vadd.f32 0.0, %v1290
      %v1292 = vpop.f32.mrb[0].mxu0
      %v1293 = vpop.f32.mrb[0].mxu0
      %v1294 = vadd.f32 0.0, %v1293
      %v1295 = vpop.f32.mrb[0].mxu0
      %1296 = vmatprep.mubr.bf16.mxu0 0
      %1297 = vmatmul.mubr.bf16.gmra.mrb[0].mxu0 %v695
      %v1298 = vpop.f32.mrb[0].mxu0
      %v1299 = vadd.f32 0.0, %v1298
      %v1300 = vpop.f32.mrb[0].mxu0
      %v1301 = vpop.f32.mrb[0].mxu0
      %v1302 = vadd.f32 0.0, %v1301
      %v1303 = vpop.f32.mrb[0].mxu0
      %1304 = vmatprep.mubr.bf16.mxu0 0
      %1305 = vmatmul.mubr.bf16.gmra.mrb[0].mxu0 %v698
      %v1306 = vpop.f32.mrb[0].mxu0
      %v1307 = vadd.f32 0.0, %v1306
      %v1308 = vpop.f32.mrb[0].mxu0
      %v1309 = vpop.f32.mrb[0].mxu0
      %v1310 = vadd.f32 0.0, %v1309
      %v1311 = vpop.f32.mrb[0].mxu0
      %1312 = vmatprep.mubr.bf16.mxu0 0
      %1313 = vmatmul.mubr.bf16.gmra.mrb[0].mxu0 %v1251
      %v1314 = vpop.f32.mrb[0].mxu0
      %v1315 = vadd.f32 0.0, %v1314
      %v1316 = vpop.f32.mrb[0].mxu0
      %v1317 = vpop.f32.mrb[0].mxu0
      %v1318 = vadd.f32 0.0, %v1317
      %v1319 = vpop.f32.mrb[0].mxu0
      %1320 = vdwg.mxu0
      %v1321 = vadd.f32 %v1239, %v1291
      %v1322 = vadd.f32 %v1240, %v1294
      %v1323 = vadd.f32 %v1241, %v1299
      %v1324 = vadd.f32 %v1242, %v1302
      %v1325 = vadd.f32 %v1243, %v1307
      %v1326 = vadd.f32 %v1244, %v1310
      %v1327 = vadd.f32 %v1245, %v1315
      %v1328 = vadd.f32 %v1246, %v1318
      %v1329 = vld [vmem:[%s2] sm:$0x1]
      %v1331 = vlaneseq
      %v1332 = vshrl.u32 %v1331, 7
      %v1333 = vsub.s32 0, %v1332
      %v1334 = vrot.slane %v1329, %v1333
      %v1336 = vmul.f32 %v1321, %v1334
      %v1337 = vmul.f32 %v1322, %v1334
      %v1338 = vmul.f32 %v1323, %v1334
      %v1339 = vmul.f32 %v1324, %v1334
      %v1340 = vmul.f32 %v1325, %v1334
      %v1341 = vmul.f32 %v1326, %v1334
      %v1342 = vmul.f32 %v1327, %v1334
      %v1343 = vmul.f32 %v1328, %v1334
      %v1344 = vld [vmem:[%s3] sm:$0x1]
      %v1346 = vlaneseq
      %v1347 = vshrl.u32 %v1346, 7
      %v1348 = vsub.s32 0, %v1347
      %v1349 = vrot.slane %v1344, %v1348
      %v1351 = vadd.f32 %v1336, %v1349
      %v1352 = vadd.f32 %v1337, %v1349
      %v1353 = vadd.f32 %v1338, %v1349
      %v1354 = vadd.f32 %v1339, %v1349
      %v1355 = vadd.f32 %v1340, %v1349
      %v1356 = vadd.f32 %v1341, %v1349
      %v1357 = vadd.f32 %v1342, %v1349
      %v1358 = vadd.f32 %v1343, %v1349
      %v1359 = vmax.f32 %v1351, 0.0
      %v1360 = vmax.f32 %v1352, 0.0
      %v1361 = vmax.f32 %v1353, 0.0
      %v1362 = vmax.f32 %v1354, 0.0
      %v1363 = vmax.f32 %v1355, 0.0
      %v1364 = vmax.f32 %v1356, 0.0
      %v1365 = vmax.f32 %v1357, 0.0
      %v1366 = vmax.f32 %v1358, 0.0
      %v1367 = vpack.c.bf16 %v1359, %v1359
      %v1368 = vpack.c.bf16 %v1360, %v1360
      %v1369 = vpack.c.bf16 %v1361, %v1361
      %v1370 = vpack.c.bf16 %v1362, %v1362
      %v1371 = vpack.c.bf16 %v1363, %v1363
      %v1372 = vpack.c.bf16 %v1364, %v1364
      %v1373 = vpack.c.bf16 %v1365, %v1365
      %v1374 = vpack.c.bf16 %v1366, %v1366
      %vm1375 = vcmask 60416
      %1376 = vst.msk [vmem:[%s197] sm:$0xf] %vm1375, %v1367
      %1377 = vst.msk [vmem:[%s197 + $0x4] sm:$0xf] %vm1375, %v1368
      %1378 = vst.msk [vmem:[%s197 + $0x8] sm:$0xf] %vm1375, %v1369
      %1379 = vst.msk [vmem:[%s197 + $0xc] sm:$0xf] %vm1375, %v1370
      %1380 = vst.msk [vmem:[%s197 + $0x10] sm:$0xf] %vm1375, %v1371
      %1381 = vst.msk [vmem:[%s197 + $0x14] sm:$0xf] %vm1375, %v1372
      %1382 = vst.msk [vmem:[%s197 + $0x18] sm:$0xf] %vm1375, %v1373
      %1383 = vst.msk [vmem:[%s197 + $0x1c] sm:$0xf] %vm1375, %v1374
      %p1384 = scmp.lt.s32.totalorder %s15, 1
      %s1385 = scalar_select %p1384, %s15, 1
      %s1386 = smul.addr %s1385, 8
      %s1387 = smul.addr %s1386, 4
      %s1388 = scalar_lea.vmem %s4, %s1387
      // Predicated region
      $region37: #{resblock50_forward.5} parent=35 // pred_check
        %p1389 = pneg %p122
      $region38: #{resblock50_forward.5} parent=35 // pred_check_branch
        %1391 = sbr.rel (%p1389) target = $region40
      $region39: #{resblock50_forward.5} parent=35 // pred_region
        _
      $region40: #{resblock50_forward.5} parent=35 // pred_fallthru
        _
    $region36: #{resblock50_forward.5} parent=5 // pred_fallthru
      _
    %p1392 = scmp.le.s32.totalorder 2, %s10
    // Predicated region
    $region41: #{resblock50_forward.5} parent=5 // pred_check
      %p1393 = pneg %p1392
    $region42: #{resblock50_forward.5} parent=5 // pred_check_branch
      %1395 = sbr.rel (%p1393) target = $region44
    $region43: #{resblock50_forward.5} parent=5 // pred_region
      %s1396 = ssub.s32 %s10, 2
      // Predicated region
      $region45: #{resblock50_forward.5} parent=43 // pred_check
        %p1397 = pneg %p128
      $region46: #{resblock50_forward.5} parent=43 // pred_check_branch
        %1399 = sbr.rel (%p1397) target = $region48
      $region47: #{resblock50_forward.5} parent=43 // pred_region
        %p1400 = scmp.lt.s32.totalorder %s16, 1
        %s1401 = scalar_select %p1400, %s16, 1
        %s1402 = smul.addr %s1401, 8
        %s1403 = smul.addr %s1402, 4
        %s1404 = scalar_lea.vmem %s4, %s1403
      $region48: #{resblock50_forward.5} parent=43 // pred_fallthru
        _
    $region44: #{resblock50_forward.5} parent=5 // pred_fallthru
      _
  $region6: #{resblock50_forward.5} parent=0 // loop_footer
    %s14 = sadd.s32 1, %s10
  $region7: #{resblock50_forward.5} parent=0 // loop_footer_branch
    %9 = sbr.rel target = $region3
  $region8: #{resblock50_forward.5} parent=0 // loop_exit
    _

</llo_original>
